<compile_context>
chip_gen: v5e
topology: v5e:2x2
jax: 0.10.0
libtpu: 0.0.40
codegen_flags: <defaults>
</compile_context>

<pallas_src>
import functools

import jax
import jax.numpy as jnp
from jax.experimental import pallas as pl
from jax.experimental.pallas import tpu as pltpu


def _round_up(x: int, m: int) -> int:
    return (x + m - 1) // m * m


def _fused_mlp_kernel(*refs, n_layers: int, bf16_elementwise: bool):
    """Fused MLP: x -> [dot + bias + ReLU]*(L-1) -> dot + bias.

    refs = (x_ref, w0, b0, w1, b1, ..., w_{L-1}, b_{L-1}, o_ref)
    x_ref: (bm, D0_pad) f32; w_i: (Di_pad, D{i+1}_pad) bf16; b_i: (1, D{i+1}_pad) f32
    o_ref: (bm, DL_pad) bf16.  All operands are fully VMEM-resident.
    """
    x_ref = refs[0]
    o_ref = refs[-1]
    wb = refs[1:-1]

    # f32 -> bf16 cast inside the kernel (cheap VPU work hidden under DMA);
    # keeps the HBM-side input a single f32 read with no staging copy.
    h = x_ref[...].astype(jnp.bfloat16)
    for i in range(n_layers):
        w = wb[2 * i][...]
        b = wb[2 * i + 1][...]
        # MXU matmul with f32 accumulation.
        y = jnp.dot(h, w, preferred_element_type=jnp.float32)
        if i < n_layers - 1:
            # TODO(synk): nn.Dropout(0.5) is identity in eval mode; training-mode
            # stochastic dropout (pltpu.prng_seed/prng_random_bits) not implemented.
            if bf16_elementwise:
                # bf16 bias-add/ReLU: halves elementwise vld/vst bytes & vreg
                # pressure on large tiles (only used on chips with bf16 VALUs).
                h = jnp.maximum(y.astype(jnp.bfloat16) + b.astype(jnp.bfloat16), 0.0)
            else:
                h = jnp.maximum(y + b, 0.0).astype(jnp.bfloat16)
        else:
            o_ref[...] = (y + b).astype(o_ref.dtype)


def init_mlp_params(key, input_dim, fcs_dims, output_dim):
    """Unpadded f32 params matching nn.Linear init (weights stored (in, out))."""
    dims = [input_dim] + list(fcs_dims) + [output_dim]
    params = []
    for i in range(len(dims) - 1):
        key, kw, kb = jax.random.split(key, 3)
        fan_in, fan_out = dims[i], dims[i + 1]
        bound = 1.0 / (fan_in ** 0.5)
        w = jax.random.uniform(kw, (fan_in, fan_out), jnp.float32, -bound, bound)
        b = jax.random.uniform(kb, (fan_out,), jnp.float32, -bound, bound)
        params.append((w, b))
    return params


def pack_params(raw_params):
    """Zero-pad every layer's in/out dims to multiples of 128; weights -> bf16."""
    packed = []
    for w, b in raw_params:
        k, n = w.shape
        kp, np_ = _round_up(k, 128), _round_up(n, 128)
        wp = jnp.zeros((kp, np_), jnp.bfloat16).at[:k, :n].set(w.astype(jnp.bfloat16))
        bp = jnp.zeros((1, np_), jnp.float32).at[0, :n].set(b)
        packed.append((wp, bp))
    return packed


def _pick_bm(B: int) -> int:
    """Batch tile: big tiles to amortize grid overhead; keep >=2 grid steps at
    large B so the parallel axis shards across both v7x TensorCores."""
    if B < 256:
        # f32 input blocks -> 8-row sublane granularity is dense.
        return _round_up(max(B, 1), 8)
    return min(1024, _round_up(pl.cdiv(B, 2), 128))


def _use_bf16_elementwise(bm: int) -> bool:
    """bf16 bias/ReLU only pays off on big tiles and needs bf16 VALUs (not v5e)."""
    if bm < 512:
        return False
    try:
        kind = jax.devices()[0].device_kind.lower()
    except Exception:
        return False
    return "v5" not in kind


def mlp_forward(x_nchw, packed_params, output_dim):
    """Reproduces MLP.forward (eval mode) with a single fused Pallas call."""
    B = x_nchw.shape[0]
    x = x_nchw.reshape(B, -1)
    d_in = x.shape[1]
    d_in_pad = packed_params[0][0].shape[0]
    out_pad = packed_params[-1][1].shape[1]
    n_layers = len(packed_params)

    bm = _pick_bm(B)
    b_pad = _round_up(B, bm)

    # Pad only if needed; keep x in f32 (no host-side bf16 staging copy).
    if (B, d_in) == (b_pad, d_in_pad):
        x_p = x
    else:
        x_p = jnp.zeros((b_pad, d_in_pad), x.dtype).at[:B, :d_in].set(x)

    inputs = [x_p]
    in_specs = [pl.BlockSpec((bm, d_in_pad), lambda i: (i, 0))]
    for w, b in packed_params:
        inputs.append(w)
        inputs.append(b)
        # Constant index_map -> weights/biases stay VMEM-resident across steps
        # (re-fetch elided after step 0).
        in_specs.append(pl.BlockSpec(w.shape, lambda i: (0, 0)))
        in_specs.append(pl.BlockSpec(b.shape, lambda i: (0, 0)))

    flops = 2 * b_pad * sum(int(w.shape[0]) * int(w.shape[1]) for w, _ in packed_params)
    bytes_accessed = (
        int(x_p.size) * 4  # f32 input read
        + sum(int(w.size) * 2 + int(b.size) * 4 for w, b in packed_params)
        + b_pad * out_pad * 2  # bf16 output write
    )

    out = pl.pallas_call(
        functools.partial(
            _fused_mlp_kernel,
            n_layers=n_layers,
            bf16_elementwise=_use_bf16_elementwise(bm),
        ),
        out_shape=jax.ShapeDtypeStruct((b_pad, out_pad), jnp.bfloat16),
        grid=(b_pad // bm,),
        in_specs=in_specs,
        out_specs=pl.BlockSpec((bm, out_pad), lambda i: (i, 0)),
        compiler_params=pltpu.CompilerParams(
            dimension_semantics=("parallel",),
        ),
        cost_estimate=pl.CostEstimate(
            flops=flops, transcendentals=0, bytes_accessed=bytes_accessed
        ),
    )(*inputs)

    # Slice padded batch / padded lanes back to (B, output_dim); upcast logits
    # to f32 to match the PyTorch module's output dtype.
    return out[:B, :output_dim].astype(jnp.float32)


def ref_forward(x_nchw, raw_params):
    """Plain-JAX reference with the same bf16-operand / f32-accum math."""
    B = x_nchw.shape[0]
    h = x_nchw.reshape(B, -1)
    n_layers = len(raw_params)
    for i, (w, b) in enumerate(raw_params):
        y = jnp.dot(
            h.astype(jnp.bfloat16),
            w.astype(jnp.bfloat16),
            preferred_element_type=jnp.float32,
        ) + b
        if i < n_layers - 1:
            h = jnp.maximum(y, 0.0)
        else:
            return y


if __name__ == "__main__":
    # data_config equivalent: input_dims=(1, 16, 16) -> input_dim=256,
    # mapping of 10 classes -> output_dim=10; fcs_dims default '1024,128,32,32'.
    B, C, H, W = 2, 1, 16, 16
    input_dim = C * H * W
    fcs_dims = [1024, 128, 32, 32]
    output_dim = 10

    key = jax.random.PRNGKey(0)
    key, kx = jax.random.split(key)
    x = jax.random.normal(kx, (B, C, H, W), jnp.float32)

    raw_params = init_mlp_params(key, input_dim, fcs_dims, output_dim)
    packed_params = pack_params(raw_params)

    out = mlp_forward(x, packed_params, output_dim)
    out = jax.block_until_ready(out)
    assert out.shape == (B, output_dim), out.shape
    assert out.dtype == jnp.float32

    # Correctness vs. a plain-JAX reference using the same bf16 operand casts.
    # Tolerance reflects bf16 matmul operands + bf16 logit writeback rounding.
    ref = ref_forward(x, raw_params)
    assert jnp.allclose(out, ref, atol=2e-2, rtol=2e-2), (out, ref)

    print("KERNEL_OK")
</pallas_src>

<mosaic_0001>
module attributes {stable_mosaic.version = 11 : i64} {
  func.func @_fused_mlp_kernel(%arg0: i32, %arg1: memref<8x256xf32, #tpu.memory_space<vmem>>, %arg2: memref<256x1024xbf16, #tpu.memory_space<vmem>>, %arg3: memref<1x1024xf32, #tpu.memory_space<vmem>>, %arg4: memref<1024x128xbf16, #tpu.memory_space<vmem>>, %arg5: memref<1x128xf32, #tpu.memory_space<vmem>>, %arg6: memref<128x128xbf16, #tpu.memory_space<vmem>>, %arg7: memref<1x128xf32, #tpu.memory_space<vmem>>, %arg8: memref<128x128xbf16, #tpu.memory_space<vmem>>, %arg9: memref<1x128xf32, #tpu.memory_space<vmem>>, %arg10: memref<128x128xbf16, #tpu.memory_space<vmem>>, %arg11: memref<1x128xf32, #tpu.memory_space<vmem>>, %arg12: memref<8x128xbf16, #tpu.memory_space<vmem>>) attributes {dimension_semantics = [#tpu.dimension_semantics<parallel>], iteration_bounds = array<i64: 1>, scalar_prefetch = 0 : i64, scratch_operands = 0 : i64, tpu.core_type = #tpu.core_type<tc>, window_params = [{transform_indices = @transform_0, window_bounds = array<i64: 8, 256>}, {pipeline_mode = #tpu.pipeline_mode<synchronous>, transform_indices = @transform_1, window_bounds = array<i64: 256, 1024>}, {pipeline_mode = #tpu.pipeline_mode<synchronous>, transform_indices = @transform_2, window_bounds = array<i64: 1, 1024>}, {pipeline_mode = #tpu.pipeline_mode<synchronous>, transform_indices = @transform_3, window_bounds = array<i64: 1024, 128>}, {pipeline_mode = #tpu.pipeline_mode<synchronous>, transform_indices = @transform_4, window_bounds = array<i64: 1, 128>}, {pipeline_mode = #tpu.pipeline_mode<synchronous>, transform_indices = @transform_5, window_bounds = array<i64: 128, 128>}, {pipeline_mode = #tpu.pipeline_mode<synchronous>, transform_indices = @transform_6, window_bounds = array<i64: 1, 128>}, {pipeline_mode = #tpu.pipeline_mode<synchronous>, transform_indices = @transform_7, window_bounds = array<i64: 128, 128>}, {pipeline_mode = #tpu.pipeline_mode<synchronous>, transform_indices = @transform_8, window_bounds = array<i64: 1, 128>}, {pipeline_mode = #tpu.pipeline_mode<synchronous>, transform_indices = @transform_9, window_bounds = array<i64: 128, 128>}, {pipeline_mode = #tpu.pipeline_mode<synchronous>, transform_indices = @transform_10, window_bounds = array<i64: 1, 128>}, {transform_indices = @transform_11, window_bounds = array<i64: 8, 128>}]} {
    %c0 = arith.constant 0 : index
    %c0_0 = arith.constant 0 : index
    %0 = vector.load %arg1[%c0, %c0_0] : memref<8x256xf32, #tpu.memory_space<vmem>>, vector<8x256xf32>
    %1 = arith.truncf %0 : vector<8x256xf32> to vector<8x256xbf16>
    %c0_1 = arith.constant 0 : index
    %c0_2 = arith.constant 0 : index
    %2 = vector.load %arg2[%c0_1, %c0_2] : memref<256x1024xbf16, #tpu.memory_space<vmem>>, vector<256x1024xbf16>
    %c0_3 = arith.constant 0 : index
    %c0_4 = arith.constant 0 : index
    %3 = vector.load %arg3[%c0_3, %c0_4] : memref<1x1024xf32, #tpu.memory_space<vmem>>, vector<1x1024xf32>
    %cst = arith.constant dense<0.000000e+00> : vector<8x1024xf32>
    %4 = tpu.matmul %1, %2, %cst {dimension_numbers = #tpu.dot_dimension_numbers<[1], [0], [0], [1], [0, 0, 1, 1], [], []>} : vector<8x256xbf16>, vector<256x1024xbf16>, vector<8x1024xf32> -> vector<8x1024xf32>
    %5 = vector.broadcast %3 : vector<1x1024xf32> to vector<8x1024xf32>
    %6 = arith.addf %4, %5 : vector<8x1024xf32>
    %cst_5 = arith.constant 0.000000e+00 : f32
    %7 = vector.broadcast %cst_5 : f32 to vector<8x1024xf32>
    %8 = arith.maximumf %6, %7 : vector<8x1024xf32>
    %9 = arith.truncf %8 : vector<8x1024xf32> to vector<8x1024xbf16>
    %c0_6 = arith.constant 0 : index
    %c0_7 = arith.constant 0 : index
    %10 = vector.load %arg4[%c0_6, %c0_7] : memref<1024x128xbf16, #tpu.memory_space<vmem>>, vector<1024x128xbf16>
    %c0_8 = arith.constant 0 : index
    %c0_9 = arith.constant 0 : index
    %11 = vector.load %arg5[%c0_8, %c0_9] : memref<1x128xf32, #tpu.memory_space<vmem>>, vector<1x128xf32>
    %cst_10 = arith.constant dense<0.000000e+00> : vector<8x128xf32>
    %12 = tpu.matmul %9, %10, %cst_10 {dimension_numbers = #tpu.dot_dimension_numbers<[1], [0], [0], [1], [0, 0, 1, 1], [], []>} : vector<8x1024xbf16>, vector<1024x128xbf16>, vector<8x128xf32> -> vector<8x128xf32>
    %13 = vector.broadcast %11 : vector<1x128xf32> to vector<8x128xf32>
    %14 = arith.addf %12, %13 : vector<8x128xf32>
    %cst_11 = arith.constant 0.000000e+00 : f32
    %15 = vector.broadcast %cst_11 : f32 to vector<8x128xf32>
    %16 = arith.maximumf %14, %15 : vector<8x128xf32>
    %17 = arith.truncf %16 : vector<8x128xf32> to vector<8x128xbf16>
    %c0_12 = arith.constant 0 : index
    %c0_13 = arith.constant 0 : index
    %18 = vector.load %arg6[%c0_12, %c0_13] : memref<128x128xbf16, #tpu.memory_space<vmem>>, vector<128x128xbf16>
    %c0_14 = arith.constant 0 : index
    %c0_15 = arith.constant 0 : index
    %19 = vector.load %arg7[%c0_14, %c0_15] : memref<1x128xf32, #tpu.memory_space<vmem>>, vector<1x128xf32>
    %cst_16 = arith.constant dense<0.000000e+00> : vector<8x128xf32>
    %20 = tpu.matmul %17, %18, %cst_16 {dimension_numbers = #tpu.dot_dimension_numbers<[1], [0], [0], [1], [0, 0, 1, 1], [], []>} : vector<8x128xbf16>, vector<128x128xbf16>, vector<8x128xf32> -> vector<8x128xf32>
    %21 = vector.broadcast %19 : vector<1x128xf32> to vector<8x128xf32>
    %22 = arith.addf %20, %21 : vector<8x128xf32>
    %cst_17 = arith.constant 0.000000e+00 : f32
    %23 = vector.broadcast %cst_17 : f32 to vector<8x128xf32>
    %24 = arith.maximumf %22, %23 : vector<8x128xf32>
    %25 = arith.truncf %24 : vector<8x128xf32> to vector<8x128xbf16>
    %c0_18 = arith.constant 0 : index
    %c0_19 = arith.constant 0 : index
    %26 = vector.load %arg8[%c0_18, %c0_19] : memref<128x128xbf16, #tpu.memory_space<vmem>>, vector<128x128xbf16>
    %c0_20 = arith.constant 0 : index
    %c0_21 = arith.constant 0 : index
    %27 = vector.load %arg9[%c0_20, %c0_21] : memref<1x128xf32, #tpu.memory_space<vmem>>, vector<1x128xf32>
    %cst_22 = arith.constant dense<0.000000e+00> : vector<8x128xf32>
    %28 = tpu.matmul %25, %26, %cst_22 {dimension_numbers = #tpu.dot_dimension_numbers<[1], [0], [0], [1], [0, 0, 1, 1], [], []>} : vector<8x128xbf16>, vector<128x128xbf16>, vector<8x128xf32> -> vector<8x128xf32>
    %29 = vector.broadcast %27 : vector<1x128xf32> to vector<8x128xf32>
    %30 = arith.addf %28, %29 : vector<8x128xf32>
    %cst_23 = arith.constant 0.000000e+00 : f32
    %31 = vector.broadcast %cst_23 : f32 to vector<8x128xf32>
    %32 = arith.maximumf %30, %31 : vector<8x128xf32>
    %33 = arith.truncf %32 : vector<8x128xf32> to vector<8x128xbf16>
    %c0_24 = arith.constant 0 : index
    %c0_25 = arith.constant 0 : index
    %34 = vector.load %arg10[%c0_24, %c0_25] : memref<128x128xbf16, #tpu.memory_space<vmem>>, vector<128x128xbf16>
    %c0_26 = arith.constant 0 : index
    %c0_27 = arith.constant 0 : index
    %35 = vector.load %arg11[%c0_26, %c0_27] : memref<1x128xf32, #tpu.memory_space<vmem>>, vector<1x128xf32>
    %cst_28 = arith.constant dense<0.000000e+00> : vector<8x128xf32>
    %36 = tpu.matmul %33, %34, %cst_28 {dimension_numbers = #tpu.dot_dimension_numbers<[1], [0], [0], [1], [0, 0, 1, 1], [], []>} : vector<8x128xbf16>, vector<128x128xbf16>, vector<8x128xf32> -> vector<8x128xf32>
    %37 = vector.broadcast %35 : vector<1x128xf32> to vector<8x128xf32>
    %38 = arith.addf %36, %37 : vector<8x128xf32>
    %39 = arith.truncf %38 : vector<8x128xf32> to vector<8x128xbf16>
    %c0_29 = arith.constant 0 : index
    %c0_30 = arith.constant 0 : index
    %40 = vector.load %arg12[%c0_29, %c0_30] : memref<8x128xbf16, #tpu.memory_space<vmem>>, vector<8x128xbf16>
    tpu.vector_store %arg12[%c0_29, %c0_30], %39 {strides = array<i32>} : memref<8x128xbf16, #tpu.memory_space<vmem>>, vector<8x128xbf16>,
    return
  }
  func.func @transform_0(%arg0: i32) -> (i32, i32) {
    %c0_i32 = arith.constant 0 : i32
    %c0_i32_0 = arith.constant 0 : i32
    return %arg0, %c0_i32 : i32, i32
  }
  func.func @transform_1(%arg0: i32) -> (i32, i32) {
    %c0_i32 = arith.constant 0 : i32
    %c0_i32_0 = arith.constant 0 : i32
    %c0_i32_1 = arith.constant 0 : i32
    return %c0_i32, %c0_i32_0 : i32, i32
  }
  func.func @transform_2(%arg0: i32) -> (i32, i32) {
    %c0_i32 = arith.constant 0 : i32
    %c0_i32_0 = arith.constant 0 : i32
    %c0_i32_1 = arith.constant 0 : i32
    return %c0_i32, %c0_i32_0 : i32, i32
  }
  func.func @transform_3(%arg0: i32) -> (i32, i32) {
    %c0_i32 = arith.constant 0 : i32
    %c0_i32_0 = arith.constant 0 : i32
    %c0_i32_1 = arith.constant 0 : i32
    return %c0_i32, %c0_i32_0 : i32, i32
  }
  func.func @transform_4(%arg0: i32) -> (i32, i32) {
    %c0_i32 = arith.constant 0 : i32
    %c0_i32_0 = arith.constant 0 : i32
    %c0_i32_1 = arith.constant 0 : i32
    return %c0_i32, %c0_i32_0 : i32, i32
  }
  func.func @transform_5(%arg0: i32) -> (i32, i32) {
    %c0_i32 = arith.constant 0 : i32
    %c0_i32_0 = arith.constant 0 : i32
    %c0_i32_1 = arith.constant 0 : i32
    return %c0_i32, %c0_i32_0 : i32, i32
  }
  func.func @transform_6(%arg0: i32) -> (i32, i32) {
    %c0_i32 = arith.constant 0 : i32
    %c0_i32_0 = arith.constant 0 : i32
    %c0_i32_1 = arith.constant 0 : i32
    return %c0_i32, %c0_i32_0 : i32, i32
  }
  func.func @transform_7(%arg0: i32) -> (i32, i32) {
    %c0_i32 = arith.constant 0 : i32
    %c0_i32_0 = arith.constant 0 : i32
    %c0_i32_1 = arith.constant 0 : i32
    return %c0_i32, %c0_i32_0 : i32, i32
  }
  func.func @transform_8(%arg0: i32) -> (i32, i32) {
    %c0_i32 = arith.constant 0 : i32
    %c0_i32_0 = arith.constant 0 : i32
    %c0_i32_1 = arith.constant 0 : i32
    return %c0_i32, %c0_i32_0 : i32, i32
  }
  func.func @transform_9(%arg0: i32) -> (i32, i32) {
    %c0_i32 = arith.constant 0 : i32
    %c0_i32_0 = arith.constant 0 : i32
    %c0_i32_1 = arith.constant 0 : i32
    return %c0_i32, %c0_i32_0 : i32, i32
  }
  func.func @transform_10(%arg0: i32) -> (i32, i32) {
    %c0_i32 = arith.constant 0 : i32
    %c0_i32_0 = arith.constant 0 : i32
    %c0_i32_1 = arith.constant 0 : i32
    return %c0_i32, %c0_i32_0 : i32, i32
  }
  func.func @transform_11(%arg0: i32) -> (i32, i32) {
    %c0_i32 = arith.constant 0 : i32
    %c0_i32_0 = arith.constant 0 : i32
    return %arg0, %c0_i32 : i32, i32
  }
}

</mosaic_0001>

<llo_original>
// kernel: tpu_custom_call.1
$region0: #{tpu_custom_call.1}
  #allocation0 [shape = 'u32[]', space=smem, size = 0x4, offset = 0x4, fixed_abs, tag = 'smem constant byte address 0x4 - core index']
  #allocation1 [shape = 'u32[72,128]{1,0:T(1,128)}', space=vmem, size = 0x9000, scoped, tag = 'internal scratch']
  %s0 = inlined_call_operand.hbm [shape: f32[8,256], index: 0, kind: input, shape index: {}]
  %s1 = inlined_call_operand.hbm [shape: bf16[256,1024], index: 1, kind: input, shape index: {}]
  %s2 = inlined_call_operand.hbm [shape: f32[1,1024], index: 2, kind: input, shape index: {}]
  %s3 = inlined_call_operand.hbm [shape: bf16[1024,128], index: 3, kind: input, shape index: {}]
  %s4 = inlined_call_operand.vmem [shape: f32[1,128], index: 4, kind: input, shape index: {}]
  %s5 = inlined_call_operand.hbm [shape: bf16[128,128], index: 5, kind: input, shape index: {}]
  %s6 = inlined_call_operand.vmem [shape: f32[1,128], index: 6, kind: input, shape index: {}]
  %s7 = inlined_call_operand.hbm [shape: bf16[128,128], index: 7, kind: input, shape index: {}]
  %s8 = inlined_call_operand.vmem [shape: f32[1,128], index: 8, kind: input, shape index: {}]
  %s9 = inlined_call_operand.hbm [shape: bf16[128,128], index: 9, kind: input, shape index: {}]
  %s10 = inlined_call_operand.vmem [shape: f32[1,128], index: 10, kind: input, shape index: {}]
  %s11 = inlined_call_operand.hbm [shape: bf16[8,128], index: 11, kind: output, shape index: {}]
  %s12 = sld [smem:[#allocation0]]
  $region82: #{tpu_custom_call.1} parent=0
    _
  %s14 = ssub.s32 1, %s12
  %s15 = scalar_select 0, %s14, %s12
  $region1: #{tpu_custom_call.1} parent=0
    #allocation2 [shape = 'u8[8192]{0}', space=vmem, size = 0x2000, scoped, tag = 'input window, operand 0, single buffered']
    #allocation3 [shape = 's32[1]{0}', space=sflag, size = 0x4, scoped, tag = 'scoped memory for tpu_custom_call.1']
    #allocation4 [shape = 's32[1]{0}', space=sflag, size = 0x4, scoped, tag = 'scoped memory for tpu_custom_call.1']
    #allocation5 [shape = 'u8[524288]{0}', space=vmem, size = 0x80000, scoped, tag = 'input window, operand 1, single buffered']
    #allocation6 [shape = 's32[1]{0}', space=sflag, size = 0x4, scoped, tag = 'scoped memory for tpu_custom_call.1']
    #allocation7 [shape = 'u8[4096]{0}', space=vmem, size = 0x1000, scoped, tag = 'input window, operand 2, single buffered']
    #allocation8 [shape = 'u8[262144]{0}', space=vmem, size = 0x40000, scoped, tag = 'input window, operand 3, single buffered']
    #allocation9 [shape = 's32[1]{0}', space=sflag, size = 0x4, scoped, tag = 'scoped memory for tpu_custom_call.1']
    #allocation10 [shape = 'u8[32768]{0}', space=vmem, size = 0x8000, scoped, tag = 'input window, operand 5, single buffered']
    #allocation11 [shape = 'u8[32768]{0}', space=vmem, size = 0x8000, scoped, tag = 'input window, operand 7, single buffered']
    #allocation12 [shape = 's32[1]{0}', space=sflag, size = 0x4, scoped, tag = 'scoped memory for tpu_custom_call.1']
    #allocation13 [shape = 'u8[32768]{0}', space=vmem, size = 0x8000, scoped, tag = 'input window, operand 9, single buffered']
    #allocation14 [shape = 'u8[2048]{0}', space=vmem, size = 0x800, scoped, tag = 'output window, operand 0, single buffered']
    %16 = vsyncpa [#allocation3], 0
    %17 = vsyncpa [#allocation6], 0
    %18 = vsyncpa [#allocation9], 0
    %19 = vsyncpa [#allocation12], 0
    %20 = vsyncpa [#allocation4], 0
    // Predicated region
    $region2: #{tpu_custom_call.1} parent=1 // pred_check
      _
    $region3: #{tpu_custom_call.1} parent=1 // pred_check_branch
      %22 = sbr.rel (0) target = $region5
    $region4: #{tpu_custom_call.1} parent=1 // pred_region
      %24 = vsyncadd [#allocation3], 0
      %s26 = sshll.u32 %s0, 4
      %s27 = int_to_ptr.hbm [resolvable:$true] %s26
      %s28 = sshll.u32 [#allocation2], 4
      %s29 = int_to_ptr.vmem [resolvable:$true] %s28
      %31 = dma.hbm_to_vmem [thread:$0]  %s27, 256, %s29, [#allocation3]
    $region5: #{tpu_custom_call.1} parent=1 // pred_fallthru
      _
    // Predicated region
    $region6: #{tpu_custom_call.1} parent=1 // pred_check
      _
    $region7: #{tpu_custom_call.1} parent=1 // pred_check_branch
      %33 = sbr.rel (0) target = $region9
    $region8: #{tpu_custom_call.1} parent=1 // pred_region
      %35 = vsyncadd [#allocation6], 0
      %s36 = sshll.u32 %s1, 4
      %s37 = int_to_ptr.hbm [resolvable:$true] %s36
      %s38 = sshll.u32 [#allocation5], 4
      %s39 = int_to_ptr.vmem [resolvable:$true] %s38
      %44 = dma.hbm_to_vmem [thread:$0]  %s37, 16384, %s39, [#allocation6], 512, 512, 32
    $region9: #{tpu_custom_call.1} parent=1 // pred_fallthru
      _
    // Predicated region
    $region10: #{tpu_custom_call.1} parent=1 // pred_check
      _
    $region11: #{tpu_custom_call.1} parent=1 // pred_check_branch
      %46 = sbr.rel (0) target = $region13
    $region12: #{tpu_custom_call.1} parent=1 // pred_region
      %48 = vsyncadd [#allocation6], 0
      %s50 = sshll.u32 %s2, 4
      %s51 = int_to_ptr.hbm [resolvable:$true] %s50
      %s52 = sshll.u32 [#allocation7], 4
      %s53 = int_to_ptr.vmem [resolvable:$true] %s52
      %55 = dma.hbm_to_vmem [thread:$0]  %s51, 128, %s53, [#allocation6]
    $region13: #{tpu_custom_call.1} parent=1 // pred_fallthru
      _
    // Predicated region
    $region14: #{tpu_custom_call.1} parent=1 // pred_check
      _
    $region15: #{tpu_custom_call.1} parent=1 // pred_check_branch
      %57 = sbr.rel (0) target = $region17
    $region16: #{tpu_custom_call.1} parent=1 // pred_region
      %59 = vsyncadd [#allocation9], 0
      %s60 = sshll.u32 %s3, 4
      %s61 = int_to_ptr.hbm [resolvable:$true] %s60
      %s62 = sshll.u32 [#allocation8], 4
      %s63 = int_to_ptr.vmem [resolvable:$true] %s62
      %68 = dma.hbm_to_vmem [thread:$0]  %s61, 8192, %s63, [#allocation9], 64, 64, 4
    $region17: #{tpu_custom_call.1} parent=1 // pred_fallthru
      _
    // Predicated region
    $region18: #{tpu_custom_call.1} parent=1 // pred_check
      _
    $region19: #{tpu_custom_call.1} parent=1 // pred_check_branch
      %70 = sbr.rel (0) target = $region21
    $region20: #{tpu_custom_call.1} parent=1 // pred_region
      _
    $region21: #{tpu_custom_call.1} parent=1 // pred_fallthru
      _
    // Predicated region
    $region22: #{tpu_custom_call.1} parent=1 // pred_check
      _
    $region23: #{tpu_custom_call.1} parent=1 // pred_check_branch
      %72 = sbr.rel (0) target = $region25
    $region24: #{tpu_custom_call.1} parent=1 // pred_region
      %74 = vsyncadd [#allocation9], 0
      %s75 = sshll.u32 %s5, 4
      %s76 = int_to_ptr.hbm [resolvable:$true] %s75
      %s77 = sshll.u32 [#allocation10], 4
      %s78 = int_to_ptr.vmem [resolvable:$true] %s77
      %83 = dma.hbm_to_vmem [thread:$0]  %s76, 1024, %s78, [#allocation9], 64, 64, 4
    $region25: #{tpu_custom_call.1} parent=1 // pred_fallthru
      _
    // Predicated region
    $region26: #{tpu_custom_call.1} parent=1 // pred_check
      _
    $region27: #{tpu_custom_call.1} parent=1 // pred_check_branch
      %85 = sbr.rel (0) target = $region29
    $region28: #{tpu_custom_call.1} parent=1 // pred_region
      _
    $region29: #{tpu_custom_call.1} parent=1 // pred_fallthru
      _
    // Predicated region
    $region30: #{tpu_custom_call.1} parent=1 // pred_check
      _
    $region31: #{tpu_custom_call.1} parent=1 // pred_check_branch
      %87 = sbr.rel (0) target = $region33
    $region32: #{tpu_custom_call.1} parent=1 // pred_region
      %89 = vsyncadd [#allocation12], 0
      %s90 = sshll.u32 %s7, 4
      %s91 = int_to_ptr.hbm [resolvable:$true] %s90
      %s92 = sshll.u32 [#allocation11], 4
      %s93 = int_to_ptr.vmem [resolvable:$true] %s92
      %98 = dma.hbm_to_vmem [thread:$0]  %s91, 1024, %s93, [#allocation12], 64, 64, 4
    $region33: #{tpu_custom_call.1} parent=1 // pred_fallthru
      _
    // Predicated region
    $region34: #{tpu_custom_call.1} parent=1 // pred_check
      _
    $region35: #{tpu_custom_call.1} parent=1 // pred_check_branch
      %100 = sbr.rel (0) target = $region37
    $region36: #{tpu_custom_call.1} parent=1 // pred_region
      _
    $region37: #{tpu_custom_call.1} parent=1 // pred_fallthru
      _
    // Predicated region
    $region38: #{tpu_custom_call.1} parent=1 // pred_check
      _
    $region39: #{tpu_custom_call.1} parent=1 // pred_check_branch
      %102 = sbr.rel (0) target = $region41
    $region40: #{tpu_custom_call.1} parent=1 // pred_region
      %104 = vsyncadd [#allocation12], 0
      %s105 = sshll.u32 %s9, 4
      %s106 = int_to_ptr.hbm [resolvable:$true] %s105
      %s107 = sshll.u32 [#allocation13], 4
      %s108 = int_to_ptr.vmem [resolvable:$true] %s107
      %113 = dma.hbm_to_vmem [thread:$0]  %s106, 1024, %s108, [#allocation12], 64, 64, 4
    $region41: #{tpu_custom_call.1} parent=1 // pred_fallthru
      _
    // Predicated region
    $region42: #{tpu_custom_call.1} parent=1 // pred_check
      _
    $region43: #{tpu_custom_call.1} parent=1 // pred_check_branch
      %115 = sbr.rel (0) target = $region45
    $region44: #{tpu_custom_call.1} parent=1 // pred_region
      _
    $region45: #{tpu_custom_call.1} parent=1 // pred_fallthru
      _
    // Predicated region
    $region46: #{tpu_custom_call.1} parent=1 // pred_check
      _
    $region47: #{tpu_custom_call.1} parent=1 // pred_check_branch
      %117 = sbr.rel (0) target = $region49
    $region48: #{tpu_custom_call.1} parent=1 // pred_region
      %119 = dma.done [#allocation3], 256
    $region49: #{tpu_custom_call.1} parent=1 // pred_fallthru
      _
    // Predicated region
    $region50: #{tpu_custom_call.1} parent=1 // pred_check
      _
    $region51: #{tpu_custom_call.1} parent=1 // pred_check_branch
      %121 = sbr.rel (0) target = $region53
    $region52: #{tpu_custom_call.1} parent=1 // pred_region
      %123 = dma.done [#allocation6], 16384
    $region53: #{tpu_custom_call.1} parent=1 // pred_fallthru
      _
    // Predicated region
    $region54: #{tpu_custom_call.1} parent=1 // pred_check
      _
    $region55: #{tpu_custom_call.1} parent=1 // pred_check_branch
      %125 = sbr.rel (0) target = $region57
    $region56: #{tpu_custom_call.1} parent=1 // pred_region
      %127 = dma.done [#allocation6], 128
    $region57: #{tpu_custom_call.1} parent=1 // pred_fallthru
      _
    // Predicated region
    $region58: #{tpu_custom_call.1} parent=1 // pred_check
      _
    $region59: #{tpu_custom_call.1} parent=1 // pred_check_branch
      %129 = sbr.rel (0) target = $region61
    $region60: #{tpu_custom_call.1} parent=1 // pred_region
      %131 = dma.done [#allocation9], 8192
    $region61: #{tpu_custom_call.1} parent=1 // pred_fallthru
      _
    // Predicated region
    $region62: #{tpu_custom_call.1} parent=1 // pred_check
      _
    $region63: #{tpu_custom_call.1} parent=1 // pred_check_branch
      %133 = sbr.rel (0) target = $region65
    $region64: #{tpu_custom_call.1} parent=1 // pred_region
      %135 = dma.done [#allocation9], 1024
    $region65: #{tpu_custom_call.1} parent=1 // pred_fallthru
      _
    // Predicated region
    $region66: #{tpu_custom_call.1} parent=1 // pred_check
      _
    $region67: #{tpu_custom_call.1} parent=1 // pred_check_branch
      %137 = sbr.rel (0) target = $region69
    $region68: #{tpu_custom_call.1} parent=1 // pred_region
      %139 = dma.done [#allocation12], 1024
    $region69: #{tpu_custom_call.1} parent=1 // pred_fallthru
      _
    // Predicated region
    $region70: #{tpu_custom_call.1} parent=1 // pred_check
      _
    $region71: #{tpu_custom_call.1} parent=1 // pred_check_branch
      %141 = sbr.rel (0) target = $region73
    $region72: #{tpu_custom_call.1} parent=1 // pred_region
      %143 = dma.done [#allocation12], 1024
    $region73: #{tpu_custom_call.1} parent=1 // pred_fallthru
      _
    %v144 = vld [vmem:[#allocation2] sm:$0xff]
    %v145 = vld [vmem:[#allocation2 + $0x8] sm:$0xff]
    %v146 = vpack.c.bf16 %v144, %v144
    %v147 = vpack.c.bf16 %v145, %v145
    %v148 = vld [vmem:[#allocation5] sm:$0xff]
    %v149 = vld [vmem:[#allocation5 + $0x8] sm:$0xff]
    %v150 = vld [vmem:[#allocation5 + $0x10] sm:$0xff]
    %v151 = vld [vmem:[#allocation5 + $0x18] sm:$0xff]
    %v152 = vld [vmem:[#allocation5 + $0x20] sm:$0xff]
    %v153 = vld [vmem:[#allocation5 + $0x28] sm:$0xff]
    %v154 = vld [vmem:[#allocation5 + $0x30] sm:$0xff]
    %v155 = vld [vmem:[#allocation5 + $0x38] sm:$0xff]
    %v156 = vld [vmem:[#allocation5 + $0x40] sm:$0xff]
    %v157 = vld [vmem:[#allocation5 + $0x48] sm:$0xff]
    %v158 = vld [vmem:[#allocation5 + $0x50] sm:$0xff]
    %v159 = vld [vmem:[#allocation5 + $0x58] sm:$0xff]
    %v160 = vld [vmem:[#allocation5 + $0x60] sm:$0xff]
    %v161 = vld [vmem:[#allocation5 + $0x68] sm:$0xff]
    %v162 = vld [vmem:[#allocation5 + $0x70] sm:$0xff]
    %v163 = vld [vmem:[#allocation5 + $0x78] sm:$0xff]
    %v164 = vld [vmem:[#allocation5 + $0x80] sm:$0xff]
    %v165 = vld [vmem:[#allocation5 + $0x88] sm:$0xff]
    %v166 = vld [vmem:[#allocation5 + $0x90] sm:$0xff]
    %v167 = vld [vmem:[#allocation5 + $0x98] sm:$0xff]
    %v168 = vld [vmem:[#allocation5 + $0xa0] sm:$0xff]
    %v169 = vld [vmem:[#allocation5 + $0xa8] sm:$0xff]
    %v170 = vld [vmem:[#allocation5 + $0xb0] sm:$0xff]
    %v171 = vld [vmem:[#allocation5 + $0xb8] sm:$0xff]
    %v172 = vld [vmem:[#allocation5 + $0xc0] sm:$0xff]
    %v173 = vld [vmem:[#allocation5 + $0xc8] sm:$0xff]
    %v174 = vld [vmem:[#allocation5 + $0xd0] sm:$0xff]
    %v175 = vld [vmem:[#allocation5 + $0xd8] sm:$0xff]
    %v176 = vld [vmem:[#allocation5 + $0xe0] sm:$0xff]
    %v177 = vld [vmem:[#allocation5 + $0xe8] sm:$0xff]
    %v178 = vld [vmem:[#allocation5 + $0xf0] sm:$0xff]
    %v179 = vld [vmem:[#allocation5 + $0xf8] sm:$0xff]
    %v180 = vld [vmem:[#allocation5 + $0x100] sm:$0xff]
    %v181 = vld [vmem:[#allocation5 + $0x108] sm:$0xff]
    %v182 = vld [vmem:[#allocation5 + $0x110] sm:$0xff]
    %v183 = vld [vmem:[#allocation5 + $0x118] sm:$0xff]
    %v184 = vld [vmem:[#allocation5 + $0x120] sm:$0xff]
    %v185 = vld [vmem:[#allocation5 + $0x128] sm:$0xff]
    %v186 = vld [vmem:[#allocation5 + $0x130] sm:$0xff]
    %v187 = vld [vmem:[#allocation5 + $0x138] sm:$0xff]
    %v188 = vld [vmem:[#allocation5 + $0x140] sm:$0xff]
    %v189 = vld [vmem:[#allocation5 + $0x148] sm:$0xff]
    %v190 = vld [vmem:[#allocation5 + $0x150] sm:$0xff]
    %v191 = vld [vmem:[#allocation5 + $0x158] sm:$0xff]
    %v192 = vld [vmem:[#allocation5 + $0x160] sm:$0xff]
    %v193 = vld [vmem:[#allocation5 + $0x168] sm:$0xff]
    %v194 = vld [vmem:[#allocation5 + $0x170] sm:$0xff]
    %v195 = vld [vmem:[#allocation5 + $0x178] sm:$0xff]
    %v196 = vld [vmem:[#allocation5 + $0x180] sm:$0xff]
    %v197 = vld [vmem:[#allocation5 + $0x188] sm:$0xff]
    %v198 = vld [vmem:[#allocation5 + $0x190] sm:$0xff]
    %v199 = vld [vmem:[#allocation5 + $0x198] sm:$0xff]
    %v200 = vld [vmem:[#allocation5 + $0x1a0] sm:$0xff]
    %v201 = vld [vmem:[#allocation5 + $0x1a8] sm:$0xff]
    %v202 = vld [vmem:[#allocation5 + $0x1b0] sm:$0xff]
    %v203 = vld [vmem:[#allocation5 + $0x1b8] sm:$0xff]
    %v204 = vld [vmem:[#allocation5 + $0x1c0] sm:$0xff]
    %v205 = vld [vmem:[#allocation5 + $0x1c8] sm:$0xff]
    %v206 = vld [vmem:[#allocation5 + $0x1d0] sm:$0xff]
    %v207 = vld [vmem:[#allocation5 + $0x1d8] sm:$0xff]
    %v208 = vld [vmem:[#allocation5 + $0x1e0] sm:$0xff]
    %v209 = vld [vmem:[#allocation5 + $0x1e8] sm:$0xff]
    %v210 = vld [vmem:[#allocation5 + $0x1f0] sm:$0xff]
    %v211 = vld [vmem:[#allocation5 + $0x1f8] sm:$0xff]
    %v212 = vld [vmem:[#allocation5 + $0x200] sm:$0xff]
    %v213 = vld [vmem:[#allocation5 + $0x208] sm:$0xff]
    %v214 = vld [vmem:[#allocation5 + $0x210] sm:$0xff]
    %v215 = vld [vmem:[#allocation5 + $0x218] sm:$0xff]
    %v216 = vld [vmem:[#allocation5 + $0x220] sm:$0xff]
    %v217 = vld [vmem:[#allocation5 + $0x228] sm:$0xff]
    %v218 = vld [vmem:[#allocation5 + $0x230] sm:$0xff]
    %v219 = vld [vmem:[#allocation5 + $0x238] sm:$0xff]
    %v220 = vld [vmem:[#allocation5 + $0x240] sm:$0xff]
    %v221 = vld [vmem:[#allocation5 + $0x248] sm:$0xff]
    %v222 = vld [vmem:[#allocation5 + $0x250] sm:$0xff]
    %v223 = vld [vmem:[#allocation5 + $0x258] sm:$0xff]
    %v224 = vld [vmem:[#allocation5 + $0x260] sm:$0xff]
    %v225 = vld [vmem:[#allocation5 + $0x268] sm:$0xff]
    %v226 = vld [vmem:[#allocation5 + $0x270] sm:$0xff]
    %v227 = vld [vmem:[#allocation5 + $0x278] sm:$0xff]
    %v228 = vld [vmem:[#allocation5 + $0x280] sm:$0xff]
    %v229 = vld [vmem:[#allocation5 + $0x288] sm:$0xff]
    %v230 = vld [vmem:[#allocation5 + $0x290] sm:$0xff]
    %v231 = vld [vmem:[#allocation5 + $0x298] sm:$0xff]
    %v232 = vld [vmem:[#allocation5 + $0x2a0] sm:$0xff]
    %v233 = vld [vmem:[#allocation5 + $0x2a8] sm:$0xff]
    %v234 = vld [vmem:[#allocation5 + $0x2b0] sm:$0xff]
    %v235 = vld [vmem:[#allocation5 + $0x2b8] sm:$0xff]
    %v236 = vld [vmem:[#allocation5 + $0x2c0] sm:$0xff]
    %v237 = vld [vmem:[#allocation5 + $0x2c8] sm:$0xff]
    %v238 = vld [vmem:[#allocation5 + $0x2d0] sm:$0xff]
    %v239 = vld [vmem:[#allocation5 + $0x2d8] sm:$0xff]
    %v240 = vld [vmem:[#allocation5 + $0x2e0] sm:$0xff]
    %v241 = vld [vmem:[#allocation5 + $0x2e8] sm:$0xff]
    %v242 = vld [vmem:[#allocation5 + $0x2f0] sm:$0xff]
    %v243 = vld [vmem:[#allocation5 + $0x2f8] sm:$0xff]
    %v244 = vld [vmem:[#allocation5 + $0x300] sm:$0xff]
    %v245 = vld [vmem:[#allocation5 + $0x308] sm:$0xff]
    %v246 = vld [vmem:[#allocation5 + $0x310] sm:$0xff]
    %v247 = vld [vmem:[#allocation5 + $0x318] sm:$0xff]
    %v248 = vld [vmem:[#allocation5 + $0x320] sm:$0xff]
    %v249 = vld [vmem:[#allocation5 + $0x328] sm:$0xff]
    %v250 = vld [vmem:[#allocation5 + $0x330] sm:$0xff]
    %v251 = vld [vmem:[#allocation5 + $0x338] sm:$0xff]
    %v252 = vld [vmem:[#allocation5 + $0x340] sm:$0xff]
    %v253 = vld [vmem:[#allocation5 + $0x348] sm:$0xff]
    %v254 = vld [vmem:[#allocation5 + $0x350] sm:$0xff]
    %v255 = vld [vmem:[#allocation5 + $0x358] sm:$0xff]
    %v256 = vld [vmem:[#allocation5 + $0x360] sm:$0xff]
    %v257 = vld [vmem:[#allocation5 + $0x368] sm:$0xff]
    %v258 = vld [vmem:[#allocation5 + $0x370] sm:$0xff]
    %v259 = vld [vmem:[#allocation5 + $0x378] sm:$0xff]
    %v260 = vld [vmem:[#allocation5 + $0x380] sm:$0xff]
    %v261 = vld [vmem:[#allocation5 + $0x388] sm:$0xff]
    %v262 = vld [vmem:[#allocation5 + $0x390] sm:$0xff]
    %v263 = vld [vmem:[#allocation5 + $0x398] sm:$0xff]
    %v264 = vld [vmem:[#allocation5 + $0x3a0] sm:$0xff]
    %v265 = vld [vmem:[#allocation5 + $0x3a8] sm:$0xff]
    %v266 = vld [vmem:[#allocation5 + $0x3b0] sm:$0xff]
    %v267 = vld [vmem:[#allocation5 + $0x3b8] sm:$0xff]
    %v268 = vld [vmem:[#allocation5 + $0x3c0] sm:$0xff]
    %v269 = vld [vmem:[#allocation5 + $0x3c8] sm:$0xff]
    %v270 = vld [vmem:[#allocation5 + $0x3d0] sm:$0xff]
    %v271 = vld [vmem:[#allocation5 + $0x3d8] sm:$0xff]
    %v272 = vld [vmem:[#allocation5 + $0x3e0] sm:$0xff]
    %v273 = vld [vmem:[#allocation5 + $0x3e8] sm:$0xff]
    %v274 = vld [vmem:[#allocation5 + $0x3f0] sm:$0xff]
    %v275 = vld [vmem:[#allocation5 + $0x3f8] sm:$0xff]
    %v276 = vld [vmem:[#allocation7] sm:$0xff]
    %v278 = vperm.slane %v276, 0
    %v279 = vperm.slane %v276, 1
    %v280 = vperm.slane %v276, 2
    %v281 = vperm.slane %v276, 3
    %v282 = vperm.slane %v276, 4
    %v283 = vperm.slane %v276, 5
    %v284 = vperm.slane %v276, 6
    %v285 = vperm.slane %v276, 7
    %v422 = vunpack.c.l.b16 %v148
    %v423 = vunpack.c.h.b16 %v148
    %v424 = vunpack.c.l.b16 %v149
    %v425 = vunpack.c.h.b16 %v149
    %v426 = vunpack.c.l.b16 %v150
    %v427 = vunpack.c.h.b16 %v150
    %v428 = vunpack.c.l.b16 %v151
    %v429 = vunpack.c.h.b16 %v151
    %v430 = vunpack.c.l.b16 %v152
    %v431 = vunpack.c.h.b16 %v152
    %v432 = vunpack.c.l.b16 %v153
    %v433 = vunpack.c.h.b16 %v153
    %v434 = vunpack.c.l.b16 %v154
    %v435 = vunpack.c.h.b16 %v154
    %v436 = vunpack.c.l.b16 %v155
    %v437 = vunpack.c.h.b16 %v155
    %v438 = vunpack.c.l.b16 %v156
    %v439 = vunpack.c.h.b16 %v156
    %v440 = vunpack.c.l.b16 %v157
    %v441 = vunpack.c.h.b16 %v157
    %v442 = vunpack.c.l.b16 %v158
    %v443 = vunpack.c.h.b16 %v158
    %v444 = vunpack.c.l.b16 %v159
    %v445 = vunpack.c.h.b16 %v159
    %v446 = vunpack.c.l.b16 %v160
    %v447 = vunpack.c.h.b16 %v160
    %v448 = vunpack.c.l.b16 %v161
    %v449 = vunpack.c.h.b16 %v161
    %v450 = vunpack.c.l.b16 %v162
    %v451 = vunpack.c.h.b16 %v162
    %v452 = vunpack.c.l.b16 %v163
    %v453 = vunpack.c.h.b16 %v163
    %v454 = vunpack.c.l.b16 %v164
    %v455 = vunpack.c.h.b16 %v164
    %v456 = vunpack.c.l.b16 %v165
    %v457 = vunpack.c.h.b16 %v165
    %v458 = vunpack.c.l.b16 %v166
    %v459 = vunpack.c.h.b16 %v166
    %v460 = vunpack.c.l.b16 %v167
    %v461 = vunpack.c.h.b16 %v167
    %v462 = vunpack.c.l.b16 %v168
    %v463 = vunpack.c.h.b16 %v168
    %v464 = vunpack.c.l.b16 %v169
    %v465 = vunpack.c.h.b16 %v169
    %v466 = vunpack.c.l.b16 %v170
    %v467 = vunpack.c.h.b16 %v170
    %v468 = vunpack.c.l.b16 %v171
    %v469 = vunpack.c.h.b16 %v171
    %v470 = vunpack.c.l.b16 %v172
    %v471 = vunpack.c.h.b16 %v172
    %v472 = vunpack.c.l.b16 %v173
    %v473 = vunpack.c.h.b16 %v173
    %v474 = vunpack.c.l.b16 %v174
    %v475 = vunpack.c.h.b16 %v174
    %v476 = vunpack.c.l.b16 %v175
    %v477 = vunpack.c.h.b16 %v175
    %v478 = vunpack.c.l.b16 %v176
    %v479 = vunpack.c.h.b16 %v176
    %v480 = vunpack.c.l.b16 %v177
    %v481 = vunpack.c.h.b16 %v177
    %v482 = vunpack.c.l.b16 %v178
    %v483 = vunpack.c.h.b16 %v178
    %v484 = vunpack.c.l.b16 %v179
    %v485 = vunpack.c.h.b16 %v179
    %v486 = vunpack.c.l.b16 %v180
    %v487 = vunpack.c.h.b16 %v180
    %v488 = vunpack.c.l.b16 %v181
    %v489 = vunpack.c.h.b16 %v181
    %v490 = vunpack.c.l.b16 %v182
    %v491 = vunpack.c.h.b16 %v182
    %v492 = vunpack.c.l.b16 %v183
    %v493 = vunpack.c.h.b16 %v183
    %v494 = vunpack.c.l.b16 %v184
    %v495 = vunpack.c.h.b16 %v184
    %v496 = vunpack.c.l.b16 %v185
    %v497 = vunpack.c.h.b16 %v185
    %v498 = vunpack.c.l.b16 %v186
    %v499 = vunpack.c.h.b16 %v186
    %v500 = vunpack.c.l.b16 %v187
    %v501 = vunpack.c.h.b16 %v187
    %v502 = vunpack.c.l.b16 %v188
    %v503 = vunpack.c.h.b16 %v188
    %v504 = vunpack.c.l.b16 %v189
    %v505 = vunpack.c.h.b16 %v189
    %v506 = vunpack.c.l.b16 %v190
    %v507 = vunpack.c.h.b16 %v190
    %v508 = vunpack.c.l.b16 %v191
    %v509 = vunpack.c.h.b16 %v191
    %v510 = vunpack.c.l.b16 %v192
    %v511 = vunpack.c.h.b16 %v192
    %v512 = vunpack.c.l.b16 %v193
    %v513 = vunpack.c.h.b16 %v193
    %v514 = vunpack.c.l.b16 %v194
    %v515 = vunpack.c.h.b16 %v194
    %v516 = vunpack.c.l.b16 %v195
    %v517 = vunpack.c.h.b16 %v195
    %v518 = vunpack.c.l.b16 %v196
    %v519 = vunpack.c.h.b16 %v196
    %v520 = vunpack.c.l.b16 %v197
    %v521 = vunpack.c.h.b16 %v197
    %v522 = vunpack.c.l.b16 %v198
    %v523 = vunpack.c.h.b16 %v198
    %v524 = vunpack.c.l.b16 %v199
    %v525 = vunpack.c.h.b16 %v199
    %v526 = vunpack.c.l.b16 %v200
    %v527 = vunpack.c.h.b16 %v200
    %v528 = vunpack.c.l.b16 %v201
    %v529 = vunpack.c.h.b16 %v201
    %v530 = vunpack.c.l.b16 %v202
    %v531 = vunpack.c.h.b16 %v202
    %v532 = vunpack.c.l.b16 %v203
    %v533 = vunpack.c.h.b16 %v203
    %v534 = vunpack.c.l.b16 %v204
    %v535 = vunpack.c.h.b16 %v204
    %v536 = vunpack.c.l.b16 %v205
    %v537 = vunpack.c.h.b16 %v205
    %v538 = vunpack.c.l.b16 %v206
    %v539 = vunpack.c.h.b16 %v206
    %v540 = vunpack.c.l.b16 %v207
    %v541 = vunpack.c.h.b16 %v207
    %v542 = vunpack.c.l.b16 %v208
    %v543 = vunpack.c.h.b16 %v208
    %v544 = vunpack.c.l.b16 %v209
    %v545 = vunpack.c.h.b16 %v209
    %v546 = vunpack.c.l.b16 %v210
    %v547 = vunpack.c.h.b16 %v210
    %v548 = vunpack.c.l.b16 %v211
    %v549 = vunpack.c.h.b16 %v211
    %v550 = vunpack.c.l.b16 %v212
    %v551 = vunpack.c.h.b16 %v212
    %v552 = vunpack.c.l.b16 %v213
    %v553 = vunpack.c.h.b16 %v213
    %v554 = vunpack.c.l.b16 %v214
    %v555 = vunpack.c.h.b16 %v214
    %v556 = vunpack.c.l.b16 %v215
    %v557 = vunpack.c.h.b16 %v215
    %v558 = vunpack.c.l.b16 %v216
    %v559 = vunpack.c.h.b16 %v216
    %v560 = vunpack.c.l.b16 %v217
    %v561 = vunpack.c.h.b16 %v217
    %v562 = vunpack.c.l.b16 %v218
    %v563 = vunpack.c.h.b16 %v218
    %v564 = vunpack.c.l.b16 %v219
    %v565 = vunpack.c.h.b16 %v219
    %v566 = vunpack.c.l.b16 %v220
    %v567 = vunpack.c.h.b16 %v220
    %v568 = vunpack.c.l.b16 %v221
    %v569 = vunpack.c.h.b16 %v221
    %v570 = vunpack.c.l.b16 %v222
    %v571 = vunpack.c.h.b16 %v222
    %v572 = vunpack.c.l.b16 %v223
    %v573 = vunpack.c.h.b16 %v223
    %v574 = vunpack.c.l.b16 %v224
    %v575 = vunpack.c.h.b16 %v224
    %v576 = vunpack.c.l.b16 %v225
    %v577 = vunpack.c.h.b16 %v225
    %v578 = vunpack.c.l.b16 %v226
    %v579 = vunpack.c.h.b16 %v226
    %v580 = vunpack.c.l.b16 %v227
    %v581 = vunpack.c.h.b16 %v227
    %v582 = vunpack.c.l.b16 %v228
    %v583 = vunpack.c.h.b16 %v228
    %v584 = vunpack.c.l.b16 %v229
    %v585 = vunpack.c.h.b16 %v229
    %v586 = vunpack.c.l.b16 %v230
    %v587 = vunpack.c.h.b16 %v230
    %v588 = vunpack.c.l.b16 %v231
    %v589 = vunpack.c.h.b16 %v231
    %v590 = vunpack.c.l.b16 %v232
    %v591 = vunpack.c.h.b16 %v232
    %v592 = vunpack.c.l.b16 %v233
    %v593 = vunpack.c.h.b16 %v233
    %v594 = vunpack.c.l.b16 %v234
    %v595 = vunpack.c.h.b16 %v234
    %v596 = vunpack.c.l.b16 %v235
    %v597 = vunpack.c.h.b16 %v235
    %v598 = vunpack.c.l.b16 %v236
    %v599 = vunpack.c.h.b16 %v236
    %v600 = vunpack.c.l.b16 %v237
    %v601 = vunpack.c.h.b16 %v237
    %v602 = vunpack.c.l.b16 %v238
    %v603 = vunpack.c.h.b16 %v238
    %v604 = vunpack.c.l.b16 %v239
    %v605 = vunpack.c.h.b16 %v239
    %v606 = vunpack.c.l.b16 %v240
    %v607 = vunpack.c.h.b16 %v240
    %v608 = vunpack.c.l.b16 %v241
    %v609 = vunpack.c.h.b16 %v241
    %v610 = vunpack.c.l.b16 %v242
    %v611 = vunpack.c.h.b16 %v242
    %v612 = vunpack.c.l.b16 %v243
    %v613 = vunpack.c.h.b16 %v243
    %v614 = vunpack.c.l.b16 %v244
    %v615 = vunpack.c.h.b16 %v244
    %v616 = vunpack.c.l.b16 %v245
    %v617 = vunpack.c.h.b16 %v245
    %v618 = vunpack.c.l.b16 %v246
    %v619 = vunpack.c.h.b16 %v246
    %v620 = vunpack.c.l.b16 %v247
    %v621 = vunpack.c.h.b16 %v247
    %v622 = vunpack.c.l.b16 %v248
    %v623 = vunpack.c.h.b16 %v248
    %v624 = vunpack.c.l.b16 %v249
    %v625 = vunpack.c.h.b16 %v249
    %v626 = vunpack.c.l.b16 %v250
    %v627 = vunpack.c.h.b16 %v250
    %v628 = vunpack.c.l.b16 %v251
    %v629 = vunpack.c.h.b16 %v251
    %v630 = vunpack.c.l.b16 %v252
    %v631 = vunpack.c.h.b16 %v252
    %v632 = vunpack.c.l.b16 %v253
    %v633 = vunpack.c.h.b16 %v253
    %v634 = vunpack.c.l.b16 %v254
    %v635 = vunpack.c.h.b16 %v254
    %v636 = vunpack.c.l.b16 %v255
    %v637 = vunpack.c.h.b16 %v255
    %v638 = vunpack.c.l.b16 %v256
    %v639 = vunpack.c.h.b16 %v256
    %v640 = vunpack.c.l.b16 %v257
    %v641 = vunpack.c.h.b16 %v257
    %v642 = vunpack.c.l.b16 %v258
    %v643 = vunpack.c.h.b16 %v258
    %v644 = vunpack.c.l.b16 %v259
    %v645 = vunpack.c.h.b16 %v259
    %v646 = vunpack.c.l.b16 %v260
    %v647 = vunpack.c.h.b16 %v260
    %v648 = vunpack.c.l.b16 %v261
    %v649 = vunpack.c.h.b16 %v261
    %v650 = vunpack.c.l.b16 %v262
    %v651 = vunpack.c.h.b16 %v262
    %v652 = vunpack.c.l.b16 %v263
    %v653 = vunpack.c.h.b16 %v263
    %v654 = vunpack.c.l.b16 %v264
    %v655 = vunpack.c.h.b16 %v264
    %v656 = vunpack.c.l.b16 %v265
    %v657 = vunpack.c.h.b16 %v265
    %v658 = vunpack.c.l.b16 %v266
    %v659 = vunpack.c.h.b16 %v266
    %v660 = vunpack.c.l.b16 %v267
    %v661 = vunpack.c.h.b16 %v267
    %v662 = vunpack.c.l.b16 %v268
    %v663 = vunpack.c.h.b16 %v268
    %v664 = vunpack.c.l.b16 %v269
    %v665 = vunpack.c.h.b16 %v269
    %v666 = vunpack.c.l.b16 %v270
    %v667 = vunpack.c.h.b16 %v270
    %v668 = vunpack.c.l.b16 %v271
    %v669 = vunpack.c.h.b16 %v271
    %v670 = vunpack.c.l.b16 %v272
    %v671 = vunpack.c.h.b16 %v272
    %v672 = vunpack.c.l.b16 %v273
    %v673 = vunpack.c.h.b16 %v273
    %v674 = vunpack.c.l.b16 %v274
    %v675 = vunpack.c.h.b16 %v274
    %v676 = vunpack.c.l.b16 %v275
    %v677 = vunpack.c.h.b16 %v275
    %v678 = vpack.c.b16 %v430, %v422
    %v679 = vpack.c.b16 %v431, %v423
    %v680 = vpack.c.b16 %v432, %v424
    %v681 = vpack.c.b16 %v433, %v425
    %v682 = vpack.c.b16 %v434, %v426
    %v683 = vpack.c.b16 %v435, %v427
    %v684 = vpack.c.b16 %v436, %v428
    %v685 = vpack.c.b16 %v437, %v429
    %v686 = vpack.c.b16 %v446, %v438
    %v687 = vpack.c.b16 %v447, %v439
    %v688 = vpack.c.b16 %v448, %v440
    %v689 = vpack.c.b16 %v449, %v441
    %v690 = vpack.c.b16 %v450, %v442
    %v691 = vpack.c.b16 %v451, %v443
    %v692 = vpack.c.b16 %v452, %v444
    %v693 = vpack.c.b16 %v453, %v445
    %v694 = vpack.c.b16 %v462, %v454
    %v695 = vpack.c.b16 %v463, %v455
    %v696 = vpack.c.b16 %v464, %v456
    %v697 = vpack.c.b16 %v465, %v457
    %v698 = vpack.c.b16 %v466, %v458
    %v699 = vpack.c.b16 %v467, %v459
    %v700 = vpack.c.b16 %v468, %v460
    %v701 = vpack.c.b16 %v469, %v461
    %v702 = vpack.c.b16 %v478, %v470
    %v703 = vpack.c.b16 %v479, %v471
    %v704 = vpack.c.b16 %v480, %v472
    %v705 = vpack.c.b16 %v481, %v473
    %v706 = vpack.c.b16 %v482, %v474
    %v707 = vpack.c.b16 %v483, %v475
    %v708 = vpack.c.b16 %v484, %v476
    %v709 = vpack.c.b16 %v485, %v477
    %v710 = vpack.c.b16 %v494, %v486
    %v711 = vpack.c.b16 %v495, %v487
    %v712 = vpack.c.b16 %v496, %v488
    %v713 = vpack.c.b16 %v497, %v489
    %v714 = vpack.c.b16 %v498, %v490
    %v715 = vpack.c.b16 %v499, %v491
    %v716 = vpack.c.b16 %v500, %v492
    %v717 = vpack.c.b16 %v501, %v493
    %v718 = vpack.c.b16 %v510, %v502
    %v719 = vpack.c.b16 %v511, %v503
    %v720 = vpack.c.b16 %v512, %v504
    %v721 = vpack.c.b16 %v513, %v505
    %v722 = vpack.c.b16 %v514, %v506
    %v723 = vpack.c.b16 %v515, %v507
    %v724 = vpack.c.b16 %v516, %v508
    %v725 = vpack.c.b16 %v517, %v509
    %v726 = vpack.c.b16 %v526, %v518
    %v727 = vpack.c.b16 %v527, %v519
    %v728 = vpack.c.b16 %v528, %v520
    %v729 = vpack.c.b16 %v529, %v521
    %v730 = vpack.c.b16 %v530, %v522
    %v731 = vpack.c.b16 %v531, %v523
    %v732 = vpack.c.b16 %v532, %v524
    %v733 = vpack.c.b16 %v533, %v525
    %v734 = vpack.c.b16 %v542, %v534
    %v735 = vpack.c.b16 %v543, %v535
    %v736 = vpack.c.b16 %v544, %v536
    %v737 = vpack.c.b16 %v545, %v537
    %v738 = vpack.c.b16 %v546, %v538
    %v739 = vpack.c.b16 %v547, %v539
    %v740 = vpack.c.b16 %v548, %v540
    %v741 = vpack.c.b16 %v549, %v541
    %v742 = vpack.c.b16 %v558, %v550
    %v743 = vpack.c.b16 %v559, %v551
    %v744 = vpack.c.b16 %v560, %v552
    %v745 = vpack.c.b16 %v561, %v553
    %v746 = vpack.c.b16 %v562, %v554
    %v747 = vpack.c.b16 %v563, %v555
    %v748 = vpack.c.b16 %v564, %v556
    %v749 = vpack.c.b16 %v565, %v557
    %v750 = vpack.c.b16 %v574, %v566
    %v751 = vpack.c.b16 %v575, %v567
    %v752 = vpack.c.b16 %v576, %v568
    %v753 = vpack.c.b16 %v577, %v569
    %v754 = vpack.c.b16 %v578, %v570
    %v755 = vpack.c.b16 %v579, %v571
    %v756 = vpack.c.b16 %v580, %v572
    %v757 = vpack.c.b16 %v581, %v573
    %v758 = vpack.c.b16 %v590, %v582
    %v759 = vpack.c.b16 %v591, %v583
    %v760 = vpack.c.b16 %v592, %v584
    %v761 = vpack.c.b16 %v593, %v585
    %v762 = vpack.c.b16 %v594, %v586
    %v763 = vpack.c.b16 %v595, %v587
    %v764 = vpack.c.b16 %v596, %v588
    %v765 = vpack.c.b16 %v597, %v589
    %v766 = vpack.c.b16 %v606, %v598
    %v767 = vpack.c.b16 %v607, %v599
    %v768 = vpack.c.b16 %v608, %v600
    %v769 = vpack.c.b16 %v609, %v601
    %v770 = vpack.c.b16 %v610, %v602
    %v771 = vpack.c.b16 %v611, %v603
    %v772 = vpack.c.b16 %v612, %v604
    %v773 = vpack.c.b16 %v613, %v605
    %v774 = vpack.c.b16 %v622, %v614
    %v775 = vpack.c.b16 %v623, %v615
    %v776 = vpack.c.b16 %v624, %v616
    %v777 = vpack.c.b16 %v625, %v617
    %v778 = vpack.c.b16 %v626, %v618
    %v779 = vpack.c.b16 %v627, %v619
    %v780 = vpack.c.b16 %v628, %v620
    %v781 = vpack.c.b16 %v629, %v621
    %v782 = vpack.c.b16 %v638, %v630
    %v783 = vpack.c.b16 %v639, %v631
    %v784 = vpack.c.b16 %v640, %v632
    %v785 = vpack.c.b16 %v641, %v633
    %v786 = vpack.c.b16 %v642, %v634
    %v787 = vpack.c.b16 %v643, %v635
    %v788 = vpack.c.b16 %v644, %v636
    %v789 = vpack.c.b16 %v645, %v637
    %v790 = vpack.c.b16 %v654, %v646
    %v791 = vpack.c.b16 %v655, %v647
    %v792 = vpack.c.b16 %v656, %v648
    %v793 = vpack.c.b16 %v657, %v649
    %v794 = vpack.c.b16 %v658, %v650
    %v795 = vpack.c.b16 %v659, %v651
    %v796 = vpack.c.b16 %v660, %v652
    %v797 = vpack.c.b16 %v661, %v653
    %v798 = vpack.c.b16 %v670, %v662
    %v799 = vpack.c.b16 %v671, %v663
    %v800 = vpack.c.b16 %v672, %v664
    %v801 = vpack.c.b16 %v673, %v665
    %v802 = vpack.c.b16 %v674, %v666
    %v803 = vpack.c.b16 %v675, %v667
    %v804 = vpack.c.b16 %v676, %v668
    %v805 = vpack.c.b16 %v677, %v669
    %934 = vmatpush.bf16.msra.mxu0 %v734
    %935 = vmatpush.bf16.msra.mxu0 %v726
    %936 = vmatpush.bf16.msra.mxu0 %v718
    %937 = vmatpush.bf16.msra.mxu0 %v710
    %938 = vmatpush.bf16.msra.mxu0 %v702
    %939 = vmatpush.bf16.msra.mxu0 %v694
    %940 = vmatpush.bf16.msra.mxu0 %v686
    %941 = vmatpush.bf16.msra.mxu0 %v678
    %942 = vmatmul.bf16.gmra.mxu0 %v146
    %v943 = vpop.f32.mrf.mxu0
    %v944 = vadd.f32 %v278, %v943
    %v945 = vpop.f32.mrf.mxu0
    %946 = vdwg.mxu0
    %947 = vmatpush.bf16.msra.mxu0 %v798
    %948 = vmatpush.bf16.msra.mxu0 %v790
    %949 = vmatpush.bf16.msra.mxu0 %v782
    %950 = vmatpush.bf16.msra.mxu0 %v774
    %951 = vmatpush.bf16.msra.mxu0 %v766
    %952 = vmatpush.bf16.msra.mxu0 %v758
    %953 = vmatpush.bf16.msra.mxu0 %v750
    %954 = vmatpush.bf16.msra.mxu0 %v742
    %955 = vmatmul.bf16.gmra.mxu0 %v147
    %v956 = vpop.f32.mrf.mxu0
    %v957 = vadd.f32 %v944, %v956
    %v958 = vpop.f32.mrf.mxu0
    %959 = vdwg.mxu0
    %960 = vmatpush.bf16.msra.mxu0 %v735
    %961 = vmatpush.bf16.msra.mxu0 %v727
    %962 = vmatpush.bf16.msra.mxu0 %v719
    %963 = vmatpush.bf16.msra.mxu0 %v711
    %964 = vmatpush.bf16.msra.mxu0 %v703
    %965 = vmatpush.bf16.msra.mxu0 %v695
    %966 = vmatpush.bf16.msra.mxu0 %v687
    %967 = vmatpush.bf16.msra.mxu0 %v679
    %968 = vmatmul.bf16.gmra.mxu0 %v146
    %v969 = vpop.f32.mrf.mxu0
    %v970 = vadd.f32 %v279, %v969
    %v971 = vpop.f32.mrf.mxu0
    %972 = vdwg.mxu0
    %973 = vmatpush.bf16.msra.mxu0 %v799
    %974 = vmatpush.bf16.msra.mxu0 %v791
    %975 = vmatpush.bf16.msra.mxu0 %v783
    %976 = vmatpush.bf16.msra.mxu0 %v775
    %977 = vmatpush.bf16.msra.mxu0 %v767
    %978 = vmatpush.bf16.msra.mxu0 %v759
    %979 = vmatpush.bf16.msra.mxu0 %v751
    %980 = vmatpush.bf16.msra.mxu0 %v743
    %981 = vmatmul.bf16.gmra.mxu0 %v147
    %v982 = vpop.f32.mrf.mxu0
    %v983 = vadd.f32 %v970, %v982
    %v984 = vpop.f32.mrf.mxu0
    %985 = vdwg.mxu0
    %986 = vmatpush.bf16.msra.mxu0 %v736
    %987 = vmatpush.bf16.msra.mxu0 %v728
    %988 = vmatpush.bf16.msra.mxu0 %v720
    %989 = vmatpush.bf16.msra.mxu0 %v712
    %990 = vmatpush.bf16.msra.mxu0 %v704
    %991 = vmatpush.bf16.msra.mxu0 %v696
    %992 = vmatpush.bf16.msra.mxu0 %v688
    %993 = vmatpush.bf16.msra.mxu0 %v680
    %994 = vmatmul.bf16.gmra.mxu0 %v146
    %v995 = vpop.f32.mrf.mxu0
    %v996 = vadd.f32 %v280, %v995
    %v997 = vpop.f32.mrf.mxu0
    %998 = vdwg.mxu0
    %999 = vmatpush.bf16.msra.mxu0 %v800
    %1000 = vmatpush.bf16.msra.mxu0 %v792
    %1001 = vmatpush.bf16.msra.mxu0 %v784
    %1002 = vmatpush.bf16.msra.mxu0 %v776
    %1003 = vmatpush.bf16.msra.mxu0 %v768
    %1004 = vmatpush.bf16.msra.mxu0 %v760
    %1005 = vmatpush.bf16.msra.mxu0 %v752
    %1006 = vmatpush.bf16.msra.mxu0 %v744
    %1007 = vmatmul.bf16.gmra.mxu0 %v147
    %v1008 = vpop.f32.mrf.mxu0
    %v1009 = vadd.f32 %v996, %v1008
    %v1010 = vpop.f32.mrf.mxu0
    %1011 = vdwg.mxu0
    %1012 = vmatpush.bf16.msra.mxu0 %v737
    %1013 = vmatpush.bf16.msra.mxu0 %v729
    %1014 = vmatpush.bf16.msra.mxu0 %v721
    %1015 = vmatpush.bf16.msra.mxu0 %v713
    %1016 = vmatpush.bf16.msra.mxu0 %v705
    %1017 = vmatpush.bf16.msra.mxu0 %v697
    %1018 = vmatpush.bf16.msra.mxu0 %v689
    %1019 = vmatpush.bf16.msra.mxu0 %v681
    %1020 = vmatmul.bf16.gmra.mxu0 %v146
    %v1021 = vpop.f32.mrf.mxu0
    %v1022 = vadd.f32 %v281, %v1021
    %v1023 = vpop.f32.mrf.mxu0
    %1024 = vdwg.mxu0
    %1025 = vmatpush.bf16.msra.mxu0 %v801
    %1026 = vmatpush.bf16.msra.mxu0 %v793
    %1027 = vmatpush.bf16.msra.mxu0 %v785
    %1028 = vmatpush.bf16.msra.mxu0 %v777
    %1029 = vmatpush.bf16.msra.mxu0 %v769
    %1030 = vmatpush.bf16.msra.mxu0 %v761
    %1031 = vmatpush.bf16.msra.mxu0 %v753
    %1032 = vmatpush.bf16.msra.mxu0 %v745
    %1033 = vmatmul.bf16.gmra.mxu0 %v147
    %v1034 = vpop.f32.mrf.mxu0
    %v1035 = vadd.f32 %v1022, %v1034
    %v1036 = vpop.f32.mrf.mxu0
    %1037 = vdwg.mxu0
    %1038 = vmatpush.bf16.msra.mxu0 %v738
    %1039 = vmatpush.bf16.msra.mxu0 %v730
    %1040 = vmatpush.bf16.msra.mxu0 %v722
    %1041 = vmatpush.bf16.msra.mxu0 %v714
    %1042 = vmatpush.bf16.msra.mxu0 %v706
    %1043 = vmatpush.bf16.msra.mxu0 %v698
    %1044 = vmatpush.bf16.msra.mxu0 %v690
    %1045 = vmatpush.bf16.msra.mxu0 %v682
    %1046 = vmatmul.bf16.gmra.mxu0 %v146
    %v1047 = vpop.f32.mrf.mxu0
    %v1048 = vadd.f32 %v282, %v1047
    %v1049 = vpop.f32.mrf.mxu0
    %1050 = vdwg.mxu0
    %1051 = vmatpush.bf16.msra.mxu0 %v802
    %1052 = vmatpush.bf16.msra.mxu0 %v794
    %1053 = vmatpush.bf16.msra.mxu0 %v786
    %1054 = vmatpush.bf16.msra.mxu0 %v778
    %1055 = vmatpush.bf16.msra.mxu0 %v770
    %1056 = vmatpush.bf16.msra.mxu0 %v762
    %1057 = vmatpush.bf16.msra.mxu0 %v754
    %1058 = vmatpush.bf16.msra.mxu0 %v746
    %1059 = vmatmul.bf16.gmra.mxu0 %v147
    %v1060 = vpop.f32.mrf.mxu0
    %v1061 = vadd.f32 %v1048, %v1060
    %v1062 = vpop.f32.mrf.mxu0
    %1063 = vdwg.mxu0
    %1064 = vmatpush.bf16.msra.mxu0 %v739
    %1065 = vmatpush.bf16.msra.mxu0 %v731
    %1066 = vmatpush.bf16.msra.mxu0 %v723
    %1067 = vmatpush.bf16.msra.mxu0 %v715
    %1068 = vmatpush.bf16.msra.mxu0 %v707
    %1069 = vmatpush.bf16.msra.mxu0 %v699
    %1070 = vmatpush.bf16.msra.mxu0 %v691
    %1071 = vmatpush.bf16.msra.mxu0 %v683
    %1072 = vmatmul.bf16.gmra.mxu0 %v146
    %v1073 = vpop.f32.mrf.mxu0
    %v1074 = vadd.f32 %v283, %v1073
    %v1075 = vpop.f32.mrf.mxu0
    %1076 = vdwg.mxu0
    %1077 = vmatpush.bf16.msra.mxu0 %v803
    %1078 = vmatpush.bf16.msra.mxu0 %v795
    %1079 = vmatpush.bf16.msra.mxu0 %v787
    %1080 = vmatpush.bf16.msra.mxu0 %v779
    %1081 = vmatpush.bf16.msra.mxu0 %v771
    %1082 = vmatpush.bf16.msra.mxu0 %v763
    %1083 = vmatpush.bf16.msra.mxu0 %v755
    %1084 = vmatpush.bf16.msra.mxu0 %v747
    %1085 = vmatmul.bf16.gmra.mxu0 %v147
    %v1086 = vpop.f32.mrf.mxu0
    %v1087 = vadd.f32 %v1074, %v1086
    %v1088 = vpop.f32.mrf.mxu0
    %1089 = vdwg.mxu0
    %1090 = vmatpush.bf16.msra.mxu0 %v740
    %1091 = vmatpush.bf16.msra.mxu0 %v732
    %1092 = vmatpush.bf16.msra.mxu0 %v724
    %1093 = vmatpush.bf16.msra.mxu0 %v716
    %1094 = vmatpush.bf16.msra.mxu0 %v708
    %1095 = vmatpush.bf16.msra.mxu0 %v700
    %1096 = vmatpush.bf16.msra.mxu0 %v692
    %1097 = vmatpush.bf16.msra.mxu0 %v684
    %1098 = vmatmul.bf16.gmra.mxu0 %v146
    %v1099 = vpop.f32.mrf.mxu0
    %v1100 = vadd.f32 %v284, %v1099
    %v1101 = vpop.f32.mrf.mxu0
    %1102 = vdwg.mxu0
    %1103 = vmatpush.bf16.msra.mxu0 %v804
    %1104 = vmatpush.bf16.msra.mxu0 %v796
    %1105 = vmatpush.bf16.msra.mxu0 %v788
    %1106 = vmatpush.bf16.msra.mxu0 %v780
    %1107 = vmatpush.bf16.msra.mxu0 %v772
    %1108 = vmatpush.bf16.msra.mxu0 %v764
    %1109 = vmatpush.bf16.msra.mxu0 %v756
    %1110 = vmatpush.bf16.msra.mxu0 %v748
    %1111 = vmatmul.bf16.gmra.mxu0 %v147
    %v1112 = vpop.f32.mrf.mxu0
    %v1113 = vadd.f32 %v1100, %v1112
    %v1114 = vpop.f32.mrf.mxu0
    %1115 = vdwg.mxu0
    %1116 = vmatpush.bf16.msra.mxu0 %v741
    %1117 = vmatpush.bf16.msra.mxu0 %v733
    %1118 = vmatpush.bf16.msra.mxu0 %v725
    %1119 = vmatpush.bf16.msra.mxu0 %v717
    %1120 = vmatpush.bf16.msra.mxu0 %v709
    %1121 = vmatpush.bf16.msra.mxu0 %v701
    %1122 = vmatpush.bf16.msra.mxu0 %v693
    %1123 = vmatpush.bf16.msra.mxu0 %v685
    %1124 = vmatmul.bf16.gmra.mxu0 %v146
    %v1125 = vpop.f32.mrf.mxu0
    %v1126 = vadd.f32 %v285, %v1125
    %v1127 = vpop.f32.mrf.mxu0
    %1128 = vdwg.mxu0
    %1129 = vmatpush.bf16.msra.mxu0 %v805
    %1130 = vmatpush.bf16.msra.mxu0 %v797
    %1131 = vmatpush.bf16.msra.mxu0 %v789
    %1132 = vmatpush.bf16.msra.mxu0 %v781
    %1133 = vmatpush.bf16.msra.mxu0 %v773
    %1134 = vmatpush.bf16.msra.mxu0 %v765
    %1135 = vmatpush.bf16.msra.mxu0 %v757
    %1136 = vmatpush.bf16.msra.mxu0 %v749
    %1137 = vmatmul.bf16.gmra.mxu0 %v147
    %v1138 = vpop.f32.mrf.mxu0
    %v1139 = vadd.f32 %v1126, %v1138
    %v1140 = vpop.f32.mrf.mxu0
    %1141 = vdwg.mxu0
    %v1142 = vmax.f32 %v957, 0.0
    %v1143 = vmax.f32 %v983, 0.0
    %v1144 = vmax.f32 %v1009, 0.0
    %v1145 = vmax.f32 %v1035, 0.0
    %v1146 = vmax.f32 %v1061, 0.0
    %v1147 = vmax.f32 %v1087, 0.0
    %v1148 = vmax.f32 %v1113, 0.0
    %v1149 = vmax.f32 %v1139, 0.0
    %v1150 = vpack.c.bf16 %v1142, %v1142
    %v1151 = vpack.c.bf16 %v1143, %v1143
    %v1152 = vpack.c.bf16 %v1144, %v1144
    %v1153 = vpack.c.bf16 %v1145, %v1145
    %v1154 = vpack.c.bf16 %v1146, %v1146
    %v1155 = vpack.c.bf16 %v1147, %v1147
    %v1156 = vpack.c.bf16 %v1148, %v1148
    %v1157 = vpack.c.bf16 %v1149, %v1149
    %v1158 = vld [vmem:[#allocation8] sm:$0xf]
    %v1159 = vld [vmem:[#allocation8 + $0x4] sm:$0xf]
    %v1160 = vld [vmem:[#allocation8 + $0x8] sm:$0xf]
    %v1161 = vld [vmem:[#allocation8 + $0xc] sm:$0xf]
    %v1162 = vld [vmem:[#allocation8 + $0x10] sm:$0xf]
    %v1163 = vld [vmem:[#allocation8 + $0x14] sm:$0xf]
    %v1164 = vld [vmem:[#allocation8 + $0x18] sm:$0xf]
    %v1165 = vld [vmem:[#allocation8 + $0x1c] sm:$0xf]
    %v1166 = vld [vmem:[#allocation8 + $0x20] sm:$0xf]
    %v1167 = vld [vmem:[#allocation8 + $0x24] sm:$0xf]
    %v1168 = vld [vmem:[#allocation8 + $0x28] sm:$0xf]
    %v1169 = vld [vmem:[#allocation8 + $0x2c] sm:$0xf]
    %v1170 = vld [vmem:[#allocation8 + $0x30] sm:$0xf]
    %v1171 = vld [vmem:[#allocation8 + $0x34] sm:$0xf]
    %v1172 = vld [vmem:[#allocation8 + $0x38] sm:$0xf]
    %v1173 = vld [vmem:[#allocation8 + $0x3c] sm:$0xf]
    %v1174 = vld [vmem:[#allocation8 + $0x40] sm:$0xf]
    %v1175 = vld [vmem:[#allocation8 + $0x44] sm:$0xf]
    %v1176 = vld [vmem:[#allocation8 + $0x48] sm:$0xf]
    %v1177 = vld [vmem:[#allocation8 + $0x4c] sm:$0xf]
    %v1178 = vld [vmem:[#allocation8 + $0x50] sm:$0xf]
    %v1179 = vld [vmem:[#allocation8 + $0x54] sm:$0xf]
    %v1180 = vld [vmem:[#allocation8 + $0x58] sm:$0xf]
    %v1181 = vld [vmem:[#allocation8 + $0x5c] sm:$0xf]
    %v1182 = vld [vmem:[#allocation8 + $0x60] sm:$0xf]
    %v1183 = vld [vmem:[#allocation8 + $0x64] sm:$0xf]
    %v1184 = vld [vmem:[#allocation8 + $0x68] sm:$0xf]
    %v1185 = vld [vmem:[#allocation8 + $0x6c] sm:$0xf]
    %v1186 = vld [vmem:[#allocation8 + $0x70] sm:$0xf]
    %v1187 = vld [vmem:[#allocation8 + $0x74] sm:$0xf]
    %v1188 = vld [vmem:[#allocation8 + $0x78] sm:$0xf]
    %v1189 = vld [vmem:[#allocation8 + $0x7c] sm:$0xf]
    %v1190 = vld [vmem:[#allocation8 + $0x80] sm:$0xf]
    %v1191 = vld [vmem:[#allocation8 + $0x84] sm:$0xf]
    %v1192 = vld [vmem:[#allocation8 + $0x88] sm:$0xf]
    %v1193 = vld [vmem:[#allocation8 + $0x8c] sm:$0xf]
    %v1194 = vld [vmem:[#allocation8 + $0x90] sm:$0xf]
    %v1195 = vld [vmem:[#allocation8 + $0x94] sm:$0xf]
    %v1196 = vld [vmem:[#allocation8 + $0x98] sm:$0xf]
    %v1197 = vld [vmem:[#allocation8 + $0x9c] sm:$0xf]
    %v1198 = vld [vmem:[#allocation8 + $0xa0] sm:$0xf]
    %v1199 = vld [vmem:[#allocation8 + $0xa4] sm:$0xf]
    %v1200 = vld [vmem:[#allocation8 + $0xa8] sm:$0xf]
    %v1201 = vld [vmem:[#allocation8 + $0xac] sm:$0xf]
    %v1202 = vld [vmem:[#allocation8 + $0xb0] sm:$0xf]
    %v1203 = vld [vmem:[#allocation8 + $0xb4] sm:$0xf]
    %v1204 = vld [vmem:[#allocation8 + $0xb8] sm:$0xf]
    %v1205 = vld [vmem:[#allocation8 + $0xbc] sm:$0xf]
    %v1206 = vld [vmem:[#allocation8 + $0xc0] sm:$0xf]
    %v1207 = vld [vmem:[#allocation8 + $0xc4] sm:$0xf]
    %v1208 = vld [vmem:[#allocation8 + $0xc8] sm:$0xf]
    %v1209 = vld [vmem:[#allocation8 + $0xcc] sm:$0xf]
    %v1210 = vld [vmem:[#allocation8 + $0xd0] sm:$0xf]
    %v1211 = vld [vmem:[#allocation8 + $0xd4] sm:$0xf]
    %v1212 = vld [vmem:[#allocation8 + $0xd8] sm:$0xf]
    %v1213 = vld [vmem:[#allocation8 + $0xdc] sm:$0xf]
    %v1214 = vld [vmem:[#allocation8 + $0xe0] sm:$0xf]
    %v1215 = vld [vmem:[#allocation8 + $0xe4] sm:$0xf]
    %v1216 = vld [vmem:[#allocation8 + $0xe8] sm:$0xf]
    %v1217 = vld [vmem:[#allocation8 + $0xec] sm:$0xf]
    %v1218 = vld [vmem:[#allocation8 + $0xf0] sm:$0xf]
    %v1219 = vld [vmem:[#allocation8 + $0xf4] sm:$0xf]
    %v1220 = vld [vmem:[#allocation8 + $0xf8] sm:$0xf]
    %v1221 = vld [vmem:[#allocation8 + $0xfc] sm:$0xf]
    %v1222 = vld [vmem:[#allocation8 + $0x100] sm:$0xf]
    %v1223 = vld [vmem:[#allocation8 + $0x104] sm:$0xf]
    %v1224 = vld [vmem:[#allocation8 + $0x108] sm:$0xf]
    %v1225 = vld [vmem:[#allocation8 + $0x10c] sm:$0xf]
    %v1226 = vld [vmem:[#allocation8 + $0x110] sm:$0xf]
    %v1227 = vld [vmem:[#allocation8 + $0x114] sm:$0xf]
    %v1228 = vld [vmem:[#allocation8 + $0x118] sm:$0xf]
    %v1229 = vld [vmem:[#allocation8 + $0x11c] sm:$0xf]
    %v1230 = vld [vmem:[#allocation8 + $0x120] sm:$0xf]
    %v1231 = vld [vmem:[#allocation8 + $0x124] sm:$0xf]
    %v1232 = vld [vmem:[#allocation8 + $0x128] sm:$0xf]
    %v1233 = vld [vmem:[#allocation8 + $0x12c] sm:$0xf]
    %v1234 = vld [vmem:[#allocation8 + $0x130] sm:$0xf]
    %v1235 = vld [vmem:[#allocation8 + $0x134] sm:$0xf]
    %v1236 = vld [vmem:[#allocation8 + $0x138] sm:$0xf]
    %v1237 = vld [vmem:[#allocation8 + $0x13c] sm:$0xf]
    %v1238 = vld [vmem:[#allocation8 + $0x140] sm:$0xf]
    %v1239 = vld [vmem:[#allocation8 + $0x144] sm:$0xf]
    %v1240 = vld [vmem:[#allocation8 + $0x148] sm:$0xf]
    %v1241 = vld [vmem:[#allocation8 + $0x14c] sm:$0xf]
    %v1242 = vld [vmem:[#allocation8 + $0x150] sm:$0xf]
    %v1243 = vld [vmem:[#allocation8 + $0x154] sm:$0xf]
    %v1244 = vld [vmem:[#allocation8 + $0x158] sm:$0xf]
    %v1245 = vld [vmem:[#allocation8 + $0x15c] sm:$0xf]
    %v1246 = vld [vmem:[#allocation8 + $0x160] sm:$0xf]
    %v1247 = vld [vmem:[#allocation8 + $0x164] sm:$0xf]
    %v1248 = vld [vmem:[#allocation8 + $0x168] sm:$0xf]
    %v1249 = vld [vmem:[#allocation8 + $0x16c] sm:$0xf]
    %v1250 = vld [vmem:[#allocation8 + $0x170] sm:$0xf]
    %v1251 = vld [vmem:[#allocation8 + $0x174] sm:$0xf]
    %v1252 = vld [vmem:[#allocation8 + $0x178] sm:$0xf]
    %v1253 = vld [vmem:[#allocation8 + $0x17c] sm:$0xf]
    %v1254 = vld [vmem:[#allocation8 + $0x180] sm:$0xf]
    %v1255 = vld [vmem:[#allocation8 + $0x184] sm:$0xf]
    %v1256 = vld [vmem:[#allocation8 + $0x188] sm:$0xf]
    %v1257 = vld [vmem:[#allocation8 + $0x18c] sm:$0xf]
    %v1258 = vld [vmem:[#allocation8 + $0x190] sm:$0xf]
    %v1259 = vld [vmem:[#allocation8 + $0x194] sm:$0xf]
    %v1260 = vld [vmem:[#allocation8 + $0x198] sm:$0xf]
    %v1261 = vld [vmem:[#allocation8 + $0x19c] sm:$0xf]
    %v1262 = vld [vmem:[#allocation8 + $0x1a0] sm:$0xf]
    %v1263 = vld [vmem:[#allocation8 + $0x1a4] sm:$0xf]
    %v1264 = vld [vmem:[#allocation8 + $0x1a8] sm:$0xf]
    %v1265 = vld [vmem:[#allocation8 + $0x1ac] sm:$0xf]
    %v1266 = vld [vmem:[#allocation8 + $0x1b0] sm:$0xf]
    %v1267 = vld [vmem:[#allocation8 + $0x1b4] sm:$0xf]
    %v1268 = vld [vmem:[#allocation8 + $0x1b8] sm:$0xf]
    %v1269 = vld [vmem:[#allocation8 + $0x1bc] sm:$0xf]
    %v1270 = vld [vmem:[#allocation8 + $0x1c0] sm:$0xf]
    %v1271 = vld [vmem:[#allocation8 + $0x1c4] sm:$0xf]
    %v1272 = vld [vmem:[#allocation8 + $0x1c8] sm:$0xf]
    %v1273 = vld [vmem:[#allocation8 + $0x1cc] sm:$0xf]
    %v1274 = vld [vmem:[#allocation8 + $0x1d0] sm:$0xf]
    %v1275 = vld [vmem:[#allocation8 + $0x1d4] sm:$0xf]
    %v1276 = vld [vmem:[#allocation8 + $0x1d8] sm:$0xf]
    %v1277 = vld [vmem:[#allocation8 + $0x1dc] sm:$0xf]
    %v1278 = vld [vmem:[#allocation8 + $0x1e0] sm:$0xf]
    %v1279 = vld [vmem:[#allocation8 + $0x1e4] sm:$0xf]
    %v1280 = vld [vmem:[#allocation8 + $0x1e8] sm:$0xf]
    %v1281 = vld [vmem:[#allocation8 + $0x1ec] sm:$0xf]
    %v1282 = vld [vmem:[#allocation8 + $0x1f0] sm:$0xf]
    %v1283 = vld [vmem:[#allocation8 + $0x1f4] sm:$0xf]
    %v1284 = vld [vmem:[#allocation8 + $0x1f8] sm:$0xf]
    %v1285 = vld [vmem:[#allocation8 + $0x1fc] sm:$0xf]
    %v1286 = vld [vmem:[%s4] sm:$0x1]
    %v1288 = vperm.slane %v1286, 0
    %v1418 = vunpack.c.l.b16 %v1158
    %v1419 = vunpack.c.l.b16 %v1159
    %v1420 = vunpack.c.l.b16 %v1160
    %v1421 = vunpack.c.l.b16 %v1161
    %v1422 = vunpack.c.l.b16 %v1162
    %v1423 = vunpack.c.l.b16 %v1163
    %v1424 = vunpack.c.l.b16 %v1164
    %v1425 = vunpack.c.l.b16 %v1165
    %v1426 = vunpack.c.l.b16 %v1166
    %v1427 = vunpack.c.l.b16 %v1167
    %v1428 = vunpack.c.l.b16 %v1168
    %v1429 = vunpack.c.l.b16 %v1169
    %v1430 = vunpack.c.l.b16 %v1170
    %v1431 = vunpack.c.l.b16 %v1171
    %v1432 = vunpack.c.l.b16 %v1172
    %v1433 = vunpack.c.l.b16 %v1173
    %v1434 = vunpack.c.l.b16 %v1174
    %v1435 = vunpack.c.l.b16 %v1175
    %v1436 = vunpack.c.l.b16 %v1176
    %v1437 = vunpack.c.l.b16 %v1177
    %v1438 = vunpack.c.l.b16 %v1178
    %v1439 = vunpack.c.l.b16 %v1179
    %v1440 = vunpack.c.l.b16 %v1180
    %v1441 = vunpack.c.l.b16 %v1181
    %v1442 = vunpack.c.l.b16 %v1182
    %v1443 = vunpack.c.l.b16 %v1183
    %v1444 = vunpack.c.l.b16 %v1184
    %v1445 = vunpack.c.l.b16 %v1185
    %v1446 = vunpack.c.l.b16 %v1186
    %v1447 = vunpack.c.l.b16 %v1187
    %v1448 = vunpack.c.l.b16 %v1188
    %v1449 = vunpack.c.l.b16 %v1189
    %v1450 = vunpack.c.l.b16 %v1190
    %v1451 = vunpack.c.l.b16 %v1191
    %v1452 = vunpack.c.l.b16 %v1192
    %v1453 = vunpack.c.l.b16 %v1193
    %v1454 = vunpack.c.l.b16 %v1194
    %v1455 = vunpack.c.l.b16 %v1195
    %v1456 = vunpack.c.l.b16 %v1196
    %v1457 = vunpack.c.l.b16 %v1197
    %v1458 = vunpack.c.l.b16 %v1198
    %v1459 = vunpack.c.l.b16 %v1199
    %v1460 = vunpack.c.l.b16 %v1200
    %v1461 = vunpack.c.l.b16 %v1201
    %v1462 = vunpack.c.l.b16 %v1202
    %v1463 = vunpack.c.l.b16 %v1203
    %v1464 = vunpack.c.l.b16 %v1204
    %v1465 = vunpack.c.l.b16 %v1205
    %v1466 = vunpack.c.l.b16 %v1206
    %v1467 = vunpack.c.l.b16 %v1207
    %v1468 = vunpack.c.l.b16 %v1208
    %v1469 = vunpack.c.l.b16 %v1209
    %v1470 = vunpack.c.l.b16 %v1210
    %v1471 = vunpack.c.l.b16 %v1211
    %v1472 = vunpack.c.l.b16 %v1212
    %v1473 = vunpack.c.l.b16 %v1213
    %v1474 = vunpack.c.l.b16 %v1214
    %v1475 = vunpack.c.l.b16 %v1215
    %v1476 = vunpack.c.l.b16 %v1216
    %v1477 = vunpack.c.l.b16 %v1217
    %v1478 = vunpack.c.l.b16 %v1218
    %v1479 = vunpack.c.l.b16 %v1219
    %v1480 = vunpack.c.l.b16 %v1220
    %v1481 = vunpack.c.l.b16 %v1221
    %v1482 = vunpack.c.l.b16 %v1222
    %v1483 = vunpack.c.l.b16 %v1223
    %v1484 = vunpack.c.l.b16 %v1224
    %v1485 = vunpack.c.l.b16 %v1225
    %v1486 = vunpack.c.l.b16 %v1226
    %v1487 = vunpack.c.l.b16 %v1227
    %v1488 = vunpack.c.l.b16 %v1228
    %v1489 = vunpack.c.l.b16 %v1229
    %v1490 = vunpack.c.l.b16 %v1230
    %v1491 = vunpack.c.l.b16 %v1231
    %v1492 = vunpack.c.l.b16 %v1232
    %v1493 = vunpack.c.l.b16 %v1233
    %v1494 = vunpack.c.l.b16 %v1234
    %v1495 = vunpack.c.l.b16 %v1235
    %v1496 = vunpack.c.l.b16 %v1236
    %v1497 = vunpack.c.l.b16 %v1237
    %v1498 = vunpack.c.l.b16 %v1238
    %v1499 = vunpack.c.l.b16 %v1239
    %v1500 = vunpack.c.l.b16 %v1240
    %v1501 = vunpack.c.l.b16 %v1241
    %v1502 = vunpack.c.l.b16 %v1242
    %v1503 = vunpack.c.l.b16 %v1243
    %v1504 = vunpack.c.l.b16 %v1244
    %v1505 = vunpack.c.l.b16 %v1245
    %v1506 = vunpack.c.l.b16 %v1246
    %v1507 = vunpack.c.l.b16 %v1247
    %v1508 = vunpack.c.l.b16 %v1248
    %v1509 = vunpack.c.l.b16 %v1249
    %v1510 = vunpack.c.l.b16 %v1250
    %v1511 = vunpack.c.l.b16 %v1251
    %v1512 = vunpack.c.l.b16 %v1252
    %v1513 = vunpack.c.l.b16 %v1253
    %v1514 = vunpack.c.l.b16 %v1254
    %v1515 = vunpack.c.l.b16 %v1255
    %v1516 = vunpack.c.l.b16 %v1256
    %v1517 = vunpack.c.l.b16 %v1257
    %v1518 = vunpack.c.l.b16 %v1258
    %v1519 = vunpack.c.l.b16 %v1259
    %v1520 = vunpack.c.l.b16 %v1260
    %v1521 = vunpack.c.l.b16 %v1261
    %v1522 = vunpack.c.l.b16 %v1262
    %v1523 = vunpack.c.l.b16 %v1263
    %v1524 = vunpack.c.l.b16 %v1264
    %v1525 = vunpack.c.l.b16 %v1265
    %v1526 = vunpack.c.l.b16 %v1266
    %v1527 = vunpack.c.l.b16 %v1267
    %v1528 = vunpack.c.l.b16 %v1268
    %v1529 = vunpack.c.l.b16 %v1269
    %v1530 = vunpack.c.l.b16 %v1270
    %v1531 = vunpack.c.l.b16 %v1271
    %v1532 = vunpack.c.l.b16 %v1272
    %v1533 = vunpack.c.l.b16 %v1273
    %v1534 = vunpack.c.l.b16 %v1274
    %v1535 = vunpack.c.l.b16 %v1275
    %v1536 = vunpack.c.l.b16 %v1276
    %v1537 = vunpack.c.l.b16 %v1277
    %v1538 = vunpack.c.l.b16 %v1278
    %v1539 = vunpack.c.l.b16 %v1279
    %v1540 = vunpack.c.l.b16 %v1280
    %v1541 = vunpack.c.l.b16 %v1281
    %v1542 = vunpack.c.l.b16 %v1282
    %v1543 = vunpack.c.l.b16 %v1283
    %v1544 = vunpack.c.l.b16 %v1284
    %v1545 = vunpack.c.l.b16 %v1285
    %v1546 = vpack.c.b16 %v1419, %v1418
    %v1547 = vpack.c.b16 %v1421, %v1420
    %v1548 = vpack.c.b16 %v1423, %v1422
    %v1549 = vpack.c.b16 %v1425, %v1424
    %v1550 = vpack.c.b16 %v1427, %v1426
    %v1551 = vpack.c.b16 %v1429, %v1428
    %v1552 = vpack.c.b16 %v1431, %v1430
    %v1553 = vpack.c.b16 %v1433, %v1432
    %v1554 = vpack.c.b16 %v1435, %v1434
    %v1555 = vpack.c.b16 %v1437, %v1436
    %v1556 = vpack.c.b16 %v1439, %v1438
    %v1557 = vpack.c.b16 %v1441, %v1440
    %v1558 = vpack.c.b16 %v1443, %v1442
    %v1559 = vpack.c.b16 %v1445, %v1444
    %v1560 = vpack.c.b16 %v1447, %v1446
    %v1561 = vpack.c.b16 %v1449, %v1448
    %v1562 = vpack.c.b16 %v1451, %v1450
    %v1563 = vpack.c.b16 %v1453, %v1452
    %v1564 = vpack.c.b16 %v1455, %v1454
    %v1565 = vpack.c.b16 %v1457, %v1456
    %v1566 = vpack.c.b16 %v1459, %v1458
    %v1567 = vpack.c.b16 %v1461, %v1460
    %v1568 = vpack.c.b16 %v1463, %v1462
    %v1569 = vpack.c.b16 %v1465, %v1464
    %v1570 = vpack.c.b16 %v1467, %v1466
    %v1571 = vpack.c.b16 %v1469, %v1468
    %v1572 = vpack.c.b16 %v1471, %v1470
    %v1573 = vpack.c.b16 %v1473, %v1472
    %v1574 = vpack.c.b16 %v1475, %v1474
    %v1575 = vpack.c.b16 %v1477, %v1476
    %v1576 = vpack.c.b16 %v1479, %v1478
    %v1577 = vpack.c.b16 %v1481, %v1480
    %v1578 = vpack.c.b16 %v1483, %v1482
    %v1579 = vpack.c.b16 %v1485, %v1484
    %v1580 = vpack.c.b16 %v1487, %v1486
    %v1581 = vpack.c.b16 %v1489, %v1488
    %v1582 = vpack.c.b16 %v1491, %v1490
    %v1583 = vpack.c.b16 %v1493, %v1492
    %v1584 = vpack.c.b16 %v1495, %v1494
    %v1585 = vpack.c.b16 %v1497, %v1496
    %v1586 = vpack.c.b16 %v1499, %v1498
    %v1587 = vpack.c.b16 %v1501, %v1500
    %v1588 = vpack.c.b16 %v1503, %v1502
    %v1589 = vpack.c.b16 %v1505, %v1504
    %v1590 = vpack.c.b16 %v1507, %v1506
    %v1591 = vpack.c.b16 %v1509, %v1508
    %v1592 = vpack.c.b16 %v1511, %v1510
    %v1593 = vpack.c.b16 %v1513, %v1512
    %v1594 = vpack.c.b16 %v1515, %v1514
    %v1595 = vpack.c.b16 %v1517, %v1516
    %v1596 = vpack.c.b16 %v1519, %v1518
    %v1597 = vpack.c.b16 %v1521, %v1520
    %v1598 = vpack.c.b16 %v1523, %v1522
    %v1599 = vpack.c.b16 %v1525, %v1524
    %v1600 = vpack.c.b16 %v1527, %v1526
    %v1601 = vpack.c.b16 %v1529, %v1528
    %v1602 = vpack.c.b16 %v1531, %v1530
    %v1603 = vpack.c.b16 %v1533, %v1532
    %v1604 = vpack.c.b16 %v1535, %v1534
    %v1605 = vpack.c.b16 %v1537, %v1536
    %v1606 = vpack.c.b16 %v1539, %v1538
    %v1607 = vpack.c.b16 %v1541, %v1540
    %v1608 = vpack.c.b16 %v1543, %v1542
    %v1609 = vpack.c.b16 %v1545, %v1544
    %1674 = vmatpush.bf16.msra.mxu0 %v1553
    %1675 = vmatpush.bf16.msra.mxu0 %v1552
    %1676 = vmatpush.bf16.msra.mxu0 %v1551
    %1677 = vmatpush.bf16.msra.mxu0 %v1550
    %1678 = vmatpush.bf16.msra.mxu0 %v1549
    %1679 = vmatpush.bf16.msra.mxu0 %v1548
    %1680 = vmatpush.bf16.msra.mxu0 %v1547
    %1681 = vmatpush.bf16.msra.mxu0 %v1546
    %1682 = vmatmul.bf16.gmra.mxu0 %v1150
    %v1683 = vpop.f32.mrf.mxu0
    %v1684 = vadd.f32 %v1288, %v1683
    %v1685 = vpop.f32.mrf.mxu0
    %1686 = vdwg.mxu0
    %1687 = vmatpush.bf16.msra.mxu0 %v1561
    %1688 = vmatpush.bf16.msra.mxu0 %v1560
    %1689 = vmatpush.bf16.msra.mxu0 %v1559
    %1690 = vmatpush.bf16.msra.mxu0 %v1558
    %1691 = vmatpush.bf16.msra.mxu0 %v1557
    %1692 = vmatpush.bf16.msra.mxu0 %v1556
    %1693 = vmatpush.bf16.msra.mxu0 %v1555
    %1694 = vmatpush.bf16.msra.mxu0 %v1554
    %1695 = vmatmul.bf16.gmra.mxu0 %v1151
    %v1696 = vpop.f32.mrf.mxu0
    %v1697 = vadd.f32 %v1684, %v1696
    %v1698 = vpop.f32.mrf.mxu0
    %1699 = vdwg.mxu0
    %1700 = vmatpush.bf16.msra.mxu0 %v1569
    %1701 = vmatpush.bf16.msra.mxu0 %v1568
    %1702 = vmatpush.bf16.msra.mxu0 %v1567
    %1703 = vmatpush.bf16.msra.mxu0 %v1566
    %1704 = vmatpush.bf16.msra.mxu0 %v1565
    %1705 = vmatpush.bf16.msra.mxu0 %v1564
    %1706 = vmatpush.bf16.msra.mxu0 %v1563
    %1707 = vmatpush.bf16.msra.mxu0 %v1562
    %1708 = vmatmul.bf16.gmra.mxu0 %v1152
    %v1709 = vpop.f32.mrf.mxu0
    %v1710 = vadd.f32 %v1697, %v1709
    %v1711 = vpop.f32.mrf.mxu0
    %1712 = vdwg.mxu0
    %1713 = vmatpush.bf16.msra.mxu0 %v1577
    %1714 = vmatpush.bf16.msra.mxu0 %v1576
    %1715 = vmatpush.bf16.msra.mxu0 %v1575
    %1716 = vmatpush.bf16.msra.mxu0 %v1574
    %1717 = vmatpush.bf16.msra.mxu0 %v1573
    %1718 = vmatpush.bf16.msra.mxu0 %v1572
    %1719 = vmatpush.bf16.msra.mxu0 %v1571
    %1720 = vmatpush.bf16.msra.mxu0 %v1570
    %1721 = vmatmul.bf16.gmra.mxu0 %v1153
    %v1722 = vpop.f32.mrf.mxu0
    %v1723 = vadd.f32 %v1710, %v1722
    %v1724 = vpop.f32.mrf.mxu0
    %1725 = vdwg.mxu0
    %1726 = vmatpush.bf16.msra.mxu0 %v1585
    %1727 = vmatpush.bf16.msra.mxu0 %v1584
    %1728 = vmatpush.bf16.msra.mxu0 %v1583
    %1729 = vmatpush.bf16.msra.mxu0 %v1582
    %1730 = vmatpush.bf16.msra.mxu0 %v1581
    %1731 = vmatpush.bf16.msra.mxu0 %v1580
    %1732 = vmatpush.bf16.msra.mxu0 %v1579
    %1733 = vmatpush.bf16.msra.mxu0 %v1578
    %1734 = vmatmul.bf16.gmra.mxu0 %v1154
    %v1735 = vpop.f32.mrf.mxu0
    %v1736 = vadd.f32 %v1723, %v1735
    %v1737 = vpop.f32.mrf.mxu0
    %1738 = vdwg.mxu0
    %1739 = vmatpush.bf16.msra.mxu0 %v1593
    %1740 = vmatpush.bf16.msra.mxu0 %v1592
    %1741 = vmatpush.bf16.msra.mxu0 %v1591
    %1742 = vmatpush.bf16.msra.mxu0 %v1590
    %1743 = vmatpush.bf16.msra.mxu0 %v1589
    %1744 = vmatpush.bf16.msra.mxu0 %v1588
    %1745 = vmatpush.bf16.msra.mxu0 %v1587
    %1746 = vmatpush.bf16.msra.mxu0 %v1586
    %1747 = vmatmul.bf16.gmra.mxu0 %v1155
    %v1748 = vpop.f32.mrf.mxu0
    %v1749 = vadd.f32 %v1736, %v1748
    %v1750 = vpop.f32.mrf.mxu0
    %1751 = vdwg.mxu0
    %1752 = vmatpush.bf16.msra.mxu0 %v1601
    %1753 = vmatpush.bf16.msra.mxu0 %v1600
    %1754 = vmatpush.bf16.msra.mxu0 %v1599
    %1755 = vmatpush.bf16.msra.mxu0 %v1598
    %1756 = vmatpush.bf16.msra.mxu0 %v1597
    %1757 = vmatpush.bf16.msra.mxu0 %v1596
    %1758 = vmatpush.bf16.msra.mxu0 %v1595
    %1759 = vmatpush.bf16.msra.mxu0 %v1594
    %1760 = vmatmul.bf16.gmra.mxu0 %v1156
    %v1761 = vpop.f32.mrf.mxu0
    %v1762 = vadd.f32 %v1749, %v1761
    %v1763 = vpop.f32.mrf.mxu0
    %1764 = vdwg.mxu0
    %1765 = vmatpush.bf16.msra.mxu0 %v1609
    %1766 = vmatpush.bf16.msra.mxu0 %v1608
    %1767 = vmatpush.bf16.msra.mxu0 %v1607
    %1768 = vmatpush.bf16.msra.mxu0 %v1606
    %1769 = vmatpush.bf16.msra.mxu0 %v1605
    %1770 = vmatpush.bf16.msra.mxu0 %v1604
    %1771 = vmatpush.bf16.msra.mxu0 %v1603
    %1772 = vmatpush.bf16.msra.mxu0 %v1602
    %1773 = vmatmul.bf16.gmra.mxu0 %v1157
    %v1774 = vpop.f32.mrf.mxu0
    %v1775 = vadd.f32 %v1762, %v1774
    %v1776 = vpop.f32.mrf.mxu0
    %1777 = vdwg.mxu0
    %v1778 = vmax.f32 %v1775, 0.0
    %v1779 = vpack.c.bf16 %v1778, %v1778
    %v1780 = vld [vmem:[#allocation10] sm:$0xf]
    %v1781 = vld [vmem:[#allocation10 + $0x4] sm:$0xf]
    %v1782 = vld [vmem:[#allocation10 + $0x8] sm:$0xf]
    %v1783 = vld [vmem:[#allocation10 + $0xc] sm:$0xf]
    %v1784 = vld [vmem:[#allocation10 + $0x10] sm:$0xf]
    %v1785 = vld [vmem:[#allocation10 + $0x14] sm:$0xf]
    %v1786 = vld [vmem:[#allocation10 + $0x18] sm:$0xf]
    %v1787 = vld [vmem:[#allocation10 + $0x1c] sm:$0xf]
    %v1788 = vld [vmem:[#allocation10 + $0x20] sm:$0xf]
    %v1789 = vld [vmem:[#allocation10 + $0x24] sm:$0xf]
    %v1790 = vld [vmem:[#allocation10 + $0x28] sm:$0xf]
    %v1791 = vld [vmem:[#allocation10 + $0x2c] sm:$0xf]
    %v1792 = vld [vmem:[#allocation10 + $0x30] sm:$0xf]
    %v1793 = vld [vmem:[#allocation10 + $0x34] sm:$0xf]
    %v1794 = vld [vmem:[#allocation10 + $0x38] sm:$0xf]
    %v1795 = vld [vmem:[#allocation10 + $0x3c] sm:$0xf]
    %v1796 = vld [vmem:[%s6] sm:$0x1]
    %v1798 = vperm.slane %v1796, 0
    %v1816 = vunpack.c.l.b16 %v1780
    %v1817 = vunpack.c.l.b16 %v1781
    %v1818 = vunpack.c.l.b16 %v1782
    %v1819 = vunpack.c.l.b16 %v1783
    %v1820 = vunpack.c.l.b16 %v1784
    %v1821 = vunpack.c.l.b16 %v1785
    %v1822 = vunpack.c.l.b16 %v1786
    %v1823 = vunpack.c.l.b16 %v1787
    %v1824 = vunpack.c.l.b16 %v1788
    %v1825 = vunpack.c.l.b16 %v1789
    %v1826 = vunpack.c.l.b16 %v1790
    %v1827 = vunpack.c.l.b16 %v1791
    %v1828 = vunpack.c.l.b16 %v1792
    %v1829 = vunpack.c.l.b16 %v1793
    %v1830 = vunpack.c.l.b16 %v1794
    %v1831 = vunpack.c.l.b16 %v1795
    %v1832 = vpack.c.b16 %v1817, %v1816
    %v1833 = vpack.c.b16 %v1819, %v1818
    %v1834 = vpack.c.b16 %v1821, %v1820
    %v1835 = vpack.c.b16 %v1823, %v1822
    %v1836 = vpack.c.b16 %v1825, %v1824
    %v1837 = vpack.c.b16 %v1827, %v1826
    %v1838 = vpack.c.b16 %v1829, %v1828
    %v1839 = vpack.c.b16 %v1831, %v1830
    %1848 = vmatpush.bf16.msra.mxu0 %v1839
    %1849 = vmatpush.bf16.msra.mxu0 %v1838
    %1850 = vmatpush.bf16.msra.mxu0 %v1837
    %1851 = vmatpush.bf16.msra.mxu0 %v1836
    %1852 = vmatpush.bf16.msra.mxu0 %v1835
    %1853 = vmatpush.bf16.msra.mxu0 %v1834
    %1854 = vmatpush.bf16.msra.mxu0 %v1833
    %1855 = vmatpush.bf16.msra.mxu0 %v1832
    %1856 = vmatmul.bf16.gmra.mxu0 %v1779
    %v1857 = vpop.f32.mrf.mxu0
    %v1858 = vadd.f32 %v1798, %v1857
    %v1859 = vpop.f32.mrf.mxu0
    %1860 = vdwg.mxu0
    %v1861 = vmax.f32 %v1858, 0.0
    %v1862 = vpack.c.bf16 %v1861, %v1861
    %v1863 = vld [vmem:[#allocation11] sm:$0xf]
    %v1864 = vld [vmem:[#allocation11 + $0x4] sm:$0xf]
    %v1865 = vld [vmem:[#allocation11 + $0x8] sm:$0xf]
    %v1866 = vld [vmem:[#allocation11 + $0xc] sm:$0xf]
    %v1867 = vld [vmem:[#allocation11 + $0x10] sm:$0xf]
    %v1868 = vld [vmem:[#allocation11 + $0x14] sm:$0xf]
    %v1869 = vld [vmem:[#allocation11 + $0x18] sm:$0xf]
    %v1870 = vld [vmem:[#allocation11 + $0x1c] sm:$0xf]
    %v1871 = vld [vmem:[#allocation11 + $0x20] sm:$0xf]
    %v1872 = vld [vmem:[#allocation11 + $0x24] sm:$0xf]
    %v1873 = vld [vmem:[#allocation11 + $0x28] sm:$0xf]
    %v1874 = vld [vmem:[#allocation11 + $0x2c] sm:$0xf]
    %v1875 = vld [vmem:[#allocation11 + $0x30] sm:$0xf]
    %v1876 = vld [vmem:[#allocation11 + $0x34] sm:$0xf]
    %v1877 = vld [vmem:[#allocation11 + $0x38] sm:$0xf]
    %v1878 = vld [vmem:[#allocation11 + $0x3c] sm:$0xf]
    %v1879 = vld [vmem:[%s8] sm:$0x1]
    %v1881 = vperm.slane %v1879, 0
    %v1899 = vunpack.c.l.b16 %v1863
    %v1900 = vunpack.c.l.b16 %v1864
    %v1901 = vunpack.c.l.b16 %v1865
    %v1902 = vunpack.c.l.b16 %v1866
    %v1903 = vunpack.c.l.b16 %v1867
    %v1904 = vunpack.c.l.b16 %v1868
    %v1905 = vunpack.c.l.b16 %v1869
    %v1906 = vunpack.c.l.b16 %v1870
    %v1907 = vunpack.c.l.b16 %v1871
    %v1908 = vunpack.c.l.b16 %v1872
    %v1909 = vunpack.c.l.b16 %v1873
    %v1910 = vunpack.c.l.b16 %v1874
    %v1911 = vunpack.c.l.b16 %v1875
    %v1912 = vunpack.c.l.b16 %v1876
    %v1913 = vunpack.c.l.b16 %v1877
    %v1914 = vunpack.c.l.b16 %v1878
    %v1915 = vpack.c.b16 %v1900, %v1899
    %v1916 = vpack.c.b16 %v1902, %v1901
    %v1917 = vpack.c.b16 %v1904, %v1903
    %v1918 = vpack.c.b16 %v1906, %v1905
    %v1919 = vpack.c.b16 %v1908, %v1907
    %v1920 = vpack.c.b16 %v1910, %v1909
    %v1921 = vpack.c.b16 %v1912, %v1911
    %v1922 = vpack.c.b16 %v1914, %v1913
    %1931 = vmatpush.bf16.msra.mxu0 %v1922
    %1932 = vmatpush.bf16.msra.mxu0 %v1921
    %1933 = vmatpush.bf16.msra.mxu0 %v1920
    %1934 = vmatpush.bf16.msra.mxu0 %v1919
    %1935 = vmatpush.bf16.msra.mxu0 %v1918
    %1936 = vmatpush.bf16.msra.mxu0 %v1917
    %1937 = vmatpush.bf16.msra.mxu0 %v1916
    %1938 = vmatpush.bf16.msra.mxu0 %v1915
    %1939 = vmatmul.bf16.gmra.mxu0 %v1862
    %v1940 = vpop.f32.mrf.mxu0
    %v1941 = vadd.f32 %v1881, %v1940
    %v1942 = vpop.f32.mrf.mxu0
    %1943 = vdwg.mxu0
    %v1944 = vmax.f32 %v1941, 0.0
    %v1945 = vpack.c.bf16 %v1944, %v1944
    %v1946 = vld [vmem:[#allocation13] sm:$0xf]
    %v1947 = vld [vmem:[#allocation13 + $0x4] sm:$0xf]
    %v1948 = vld [vmem:[#allocation13 + $0x8] sm:$0xf]
    %v1949 = vld [vmem:[#allocation13 + $0xc] sm:$0xf]
    %v1950 = vld [vmem:[#allocation13 + $0x10] sm:$0xf]
    %v1951 = vld [vmem:[#allocation13 + $0x14] sm:$0xf]
    %v1952 = vld [vmem:[#allocation13 + $0x18] sm:$0xf]
    %v1953 = vld [vmem:[#allocation13 + $0x1c] sm:$0xf]
    %v1954 = vld [vmem:[#allocation13 + $0x20] sm:$0xf]
    %v1955 = vld [vmem:[#allocation13 + $0x24] sm:$0xf]
    %v1956 = vld [vmem:[#allocation13 + $0x28] sm:$0xf]
    %v1957 = vld [vmem:[#allocation13 + $0x2c] sm:$0xf]
    %v1958 = vld [vmem:[#allocation13 + $0x30] sm:$0xf]
    %v1959 = vld [vmem:[#allocation13 + $0x34] sm:$0xf]
    %v1960 = vld [vmem:[#allocation13 + $0x38] sm:$0xf]
    %v1961 = vld [vmem:[#allocation13 + $0x3c] sm:$0xf]
    %v1962 = vld [vmem:[%s10] sm:$0x1]
    %v1964 = vperm.slane %v1962, 0
    %v1982 = vunpack.c.l.b16 %v1946
    %v1983 = vunpack.c.l.b16 %v1947
    %v1984 = vunpack.c.l.b16 %v1948
    %v1985 = vunpack.c.l.b16 %v1949
    %v1986 = vunpack.c.l.b16 %v1950
    %v1987 = vunpack.c.l.b16 %v1951
    %v1988 = vunpack.c.l.b16 %v1952
    %v1989 = vunpack.c.l.b16 %v1953
    %v1990 = vunpack.c.l.b16 %v1954
    %v1991 = vunpack.c.l.b16 %v1955
    %v1992 = vunpack.c.l.b16 %v1956
    %v1993 = vunpack.c.l.b16 %v1957
    %v1994 = vunpack.c.l.b16 %v1958
    %v1995 = vunpack.c.l.b16 %v1959
    %v1996 = vunpack.c.l.b16 %v1960
    %v1997 = vunpack.c.l.b16 %v1961
    %v1998 = vpack.c.b16 %v1983, %v1982
    %v1999 = vpack.c.b16 %v1985, %v1984
    %v2000 = vpack.c.b16 %v1987, %v1986
    %v2001 = vpack.c.b16 %v1989, %v1988
    %v2002 = vpack.c.b16 %v1991, %v1990
    %v2003 = vpack.c.b16 %v1993, %v1992
    %v2004 = vpack.c.b16 %v1995, %v1994
    %v2005 = vpack.c.b16 %v1997, %v1996
    %2014 = vmatpush.bf16.msra.mxu0 %v2005
    %2015 = vmatpush.bf16.msra.mxu0 %v2004
    %2016 = vmatpush.bf16.msra.mxu0 %v2003
    %2017 = vmatpush.bf16.msra.mxu0 %v2002
    %2018 = vmatpush.bf16.msra.mxu0 %v2001
    %2019 = vmatpush.bf16.msra.mxu0 %v2000
    %2020 = vmatpush.bf16.msra.mxu0 %v1999
    %2021 = vmatpush.bf16.msra.mxu0 %v1998
    %2022 = vmatmul.bf16.gmra.mxu0 %v1945
    %v2023 = vpop.f32.mrf.mxu0
    %v2024 = vadd.f32 %v1964, %v2023
    %v2025 = vpop.f32.mrf.mxu0
    %2026 = vdwg.mxu0
    %v2027 = vpack.c.bf16 %v2024, %v2024
    %2028 = vst [vmem:[#allocation14] sm:$0xf] %v2027
    // Predicated region
    $region74: #{tpu_custom_call.1} parent=1 // pred_check
      _
    $region75: #{tpu_custom_call.1} parent=1 // pred_check_branch
      %2030 = sbr.rel (0) target = $region77
    $region76: #{tpu_custom_call.1} parent=1 // pred_region
      %2032 = vsyncadd [#allocation4], 0
      %s2034 = sshll.u32 [#allocation14], 4
      %s2035 = int_to_ptr.vmem [resolvable:$true] %s2034
      %s2036 = sshll.u32 %s11, 4
      %s2037 = int_to_ptr.hbm [resolvable:$true] %s2036
      %2039 = dma.vmem_to_hbm [thread:$0]  %s2035, 64, %s2037, [#allocation4]
    $region77: #{tpu_custom_call.1} parent=1 // pred_fallthru
      _
    // Predicated region
    $region78: #{tpu_custom_call.1} parent=1 // pred_check
      _
    $region79: #{tpu_custom_call.1} parent=1 // pred_check_branch
      %2041 = sbr.rel (0) target = $region81
    $region80: #{tpu_custom_call.1} parent=1 // pred_region
      %2043 = dma.done [#allocation4], 64
    $region81: #{tpu_custom_call.1} parent=1 // pred_fallthru
      _
    %2044 = vsyncpa [#allocation3], 1
    %2045 = vsyncpa [#allocation6], 1
    %2046 = vsyncpa [#allocation9], 1
    %2047 = vsyncpa [#allocation12], 1
    %2048 = vsyncpa [#allocation4], 1

</llo_original>
